<compile_context>
chip_gen: v6e
topology: v6e:2x2x1
jax: 0.10.0
libtpu: 0.0.40
codegen_flags: <defaults>
</compile_context>

<pallas_src>
import functools

import jax
import jax.numpy as jnp
from jax.experimental import pallas as pl
from jax.experimental.pallas import tpu as pltpu  # noqa: F401  (kept for future batch-tiled variant)


OC_PAD = 128        # lane-dense padding for every per-channel axis
K1_PAD = 128        # layer-1 contraction dim padded to a full lane group
BN_EPS = 1e-5
NEG_SLOPE = 0.2


def _full_spec(shape):
    """Single-block (no grid) spec: whole array resident in VMEM."""
    return pl.BlockSpec(shape, lambda: (0,) * len(shape))


def _masked_stats(z, mask, count):
    """Two-pass (centered) biased batch stats over axis 0, masked rows excluded."""
    mean = jnp.sum(z * mask, axis=0, keepdims=True) / count
    zc = (z - mean) * mask
    var = jnp.maximum(jnp.sum(zc * zc, axis=0, keepdims=True) / count, 0.0)
    return zc, var


def _bn_lrelu_centered(z_centered, var, gamma, beta):
    y = z_centered * jax.lax.rsqrt(var + BN_EPS) * gamma + beta
    return jnp.where(y > 0, y, NEG_SLOPE * y)


# -----------------------------------------------------------------------------
# Fused kernel
# -----------------------------------------------------------------------------
def _fused_disc_kernel(p1_ref, mask1_ref, w1_ref, g1_ref, b1_ref,
                       w2_ref, g2_ref, b2_ref, mask2_ref, w3_ref,
                       o_ref, *, n, c1):
    """Whole Discriminator forward; every operand is VMEM resident.

       p1_ref   : (n*256, 128) bf16  layer-1 im2col, rows ordered
                                     (nb, y%2, y//2, x%2, x//2) over the PADDED
                                     16x16 layer-1 output grid (pad rows are 0),
                                     cols (kh,kw,c) zero-padded to 128.
       mask1_ref: (n*256, 1)   f32   1 for real layer-1 output rows, 0 for pad ring
       w1_ref   : (128, 128)   bf16  conv1 weight as tap matrix (zero-padded)
       g1/b1    : (1, 128)     f32   BN1 gamma/beta (zero-padded lanes)
       w2_ref   : (16*c1, 128) bf16  conv2 weight as tap matrix, OC zero-padded
       g2/b2    : (1, 128)     f32
       mask2_ref: (n*56, 1)    f32   1 for real (ow<7) layer-2 rows
       w3_ref   : (56, 128)    f32   conv3 weight, rows (oh, ow<=7), zero-padded
       o_ref    : (n, 128)     f32   lane 0 holds the logit
    """
    f32 = jnp.float32
    m1 = n * 14 * 14            # real layer-1 rows
    m2 = n * 7 * 7              # real layer-2 rows

    mask1 = mask1_ref[...]
    mask2 = mask2_ref[...]

    # ---- layer 1: conv(4x4,s2,p1) == ONE (n*256,128)x(128,128) MXU matmul ----
    z1 = jnp.dot(p1_ref[...], w1_ref[...], preferred_element_type=f32)   # (n*256,128)
    zc1, var1 = _masked_stats(z1, mask1, m1)
    # mask after LReLU so the pad-ring rows are exactly 0 for layer 2.
    h1 = _bn_lrelu_centered(zc1, var1, g1_ref[...], b1_ref[...]) * mask1

    # Reinterpret rows as (nb, py, yy, px, xx): a pure relabel -- the minor
    # (sublane=8, lane=128) tiling is unchanged, so no data movement.
    h1 = h1.reshape(n, 2, 8, 2, 8, OC_PAD)

    # ---- layer 2: build (n*56, 16*c1) im2col with 16 contiguous-slice taps, --
    # ---- one lane concat, a single bf16 cast, ONE batched MXU matmul ---------
    zeros_col = jnp.zeros((n, 7, 1, c1), f32)
    taps = []
    for kh in range(4):
        for kw in range(4):
            # padded row Y = 2*oh + kh -> parity kh%2, index oh + kh//2
            # padded col X = 2*ow + kw -> parity kw%2, index ow + kw//2
            t = h1[:, kh % 2, kh // 2:kh // 2 + 7, kw % 2, :, :c1]   # (n,7,8,c1)
            if kw >= 2:
                # need xx = ow + 1: shift left by one, append a zero column;
                # the ow==7 row is an alignment row (masked out of BN stats,
                # zero-weighted in w3).
                t = jnp.concatenate([t[:, :, 1:, :], zeros_col], axis=2)
            taps.append(t)
    patches = jnp.concatenate(taps, axis=-1)                          # (n,7,8,16*c1)
    patches = patches.reshape(n * 56, 16 * c1).astype(jnp.bfloat16)   # single cast
    z2 = jnp.dot(patches, w2_ref[...], preferred_element_type=f32)    # (n*56,128)

    zc2, var2 = _masked_stats(z2, mask2, m2)
    h2 = _bn_lrelu_centered(zc2, var2, g2_ref[...], b2_ref[...])      # (n*56,128)

    # ---- layer 3: 7x7 valid conv == per-sample multiply + full reduction -----
    prod = h2.reshape(n, 56, OC_PAD) * w3_ref[...][None, :, :]        # broadcast hoisted once
    row_sum = jnp.sum(prod, axis=2, keepdims=True)                    # (n,56,1)  lane reduce
    logit = jnp.sum(row_sum, axis=1)                                  # (n,1)     sublane reduce
    o_ref[...] = jnp.broadcast_to(logit, (n, OC_PAD))                 # one lane-dense store


# -----------------------------------------------------------------------------
# Wrapper: boundary layout conversion + weight packing + pallas_call
# -----------------------------------------------------------------------------
def _pad_lanes(a2d, width=OC_PAD):
    return jnp.pad(a2d, ((0, 0), (0, width - a2d.shape[1])))


def _conv_weight_as_tap_matrix(w):
    """(OC, C, KH, KW) -> (KH*KW*C, OC), rows ordered (kh, kw, c)."""
    oc = w.shape[0]
    return jnp.transpose(w, (2, 3, 1, 0)).reshape(-1, oc)


def _to_parity_rows(a):
    """(n,14,14,K) -> (n*256,K): pad spatial to 16x16 (zero ring) and order rows
    as (nb, y%2, y//2, x%2, x//2) so in-kernel stride-2 taps are contiguous."""
    n, _, _, k = a.shape
    a = jnp.pad(a, ((0, 0), (1, 1), (1, 1), (0, 0)))         # (n,16,16,K)
    a = a.reshape(n, 8, 2, 8, 2, k)                          # (nb, yy, py, xx, px, K)
    a = jnp.transpose(a, (0, 2, 1, 4, 3, 5))                 # (nb, py, yy, px, xx, K)
    return a.reshape(n * 256, k)


def discriminator_forward(x, params):
    n, c_in, h, w = x.shape
    assert h == 28 and w == 28, "this Discriminator expects 28x28 inputs"
    c1 = params["w1"].shape[0]            # hidden_dim
    c2 = params["w2"].shape[0]            # hidden_dim * 2
    assert params["w2"].shape[1] == c1
    assert 16 * c_in <= K1_PAD and c1 <= OC_PAD and c2 <= OC_PAD
    f32, bf16 = jnp.float32, jnp.bfloat16

    # ---- layer-1 im2col at the XLA boundary (one-time layout conversion) -----
    # TODO(synk): fold the NCHW->NHWC transpose + pad + im2col into the kernel
    # (pass padded NHWC x) to shave the remaining boundary launches / HBM trip.
    xh = jnp.transpose(x, (0, 2, 3, 1)).astype(f32)                    # NHWC
    xp = jnp.pad(xh, ((0, 0), (1, 1), (1, 1), (0, 0)))                 # (n,30,30,C)
    taps = [xp[:, kh:kh + 28:2, kw:kw + 28:2, :]
            for kh in range(4) for kw in range(4)]
    p = jnp.concatenate(taps, axis=-1)                                  # (n,14,14,16*C)
    p1 = _to_parity_rows(p)                                             # (n*256, 16*C)
    p1 = jnp.pad(p1, ((0, 0), (0, K1_PAD - p1.shape[1]))).astype(bf16)  # lane-dense K
    mask1 = _to_parity_rows(jnp.ones((n, 14, 14, 1), f32))              # (n*256, 1)

    # mask for the layer-2 alignment rows (ow == 7 is not a real output column)
    mask2 = jnp.pad(jnp.ones((n, 7, 7, 1), f32),
                    ((0, 0), (0, 0), (0, 1), (0, 0))).reshape(n * 56, 1)

    # ---- weights / BN params, ZERO-padded to 128 lanes (load-bearing) --------
    w1m = _conv_weight_as_tap_matrix(params["w1"])                      # (16*c_in, c1)
    w1m = jnp.pad(w1m, ((0, K1_PAD - w1m.shape[0]),
                        (0, OC_PAD - c1))).astype(bf16)                 # (128,128)
    # NOTE(v6e/v7x): layer-2 K = 16*c1 = 256 exactly fills one MXU K pass (two
    # on v5e); if hidden_dim changes, pad K here to the next 256 multiple.
    w2m = _pad_lanes(_conv_weight_as_tap_matrix(params["w2"])).astype(bf16)  # (16*c1,128)
    w3s = jnp.transpose(params["w3"][0], (1, 2, 0))                     # (7,7,c2)
    w3s = jnp.pad(w3s, ((0, 0), (0, 1), (0, 0)))                        # (7,8,c2) zero ow==7
    w3m = _pad_lanes(w3s.reshape(56, c2)).astype(f32)                   # (56,128)
    g1 = _pad_lanes(params["g1"][None, :]).astype(f32)
    b1 = _pad_lanes(params["b1"][None, :]).astype(f32)
    g2 = _pad_lanes(params["g2"][None, :]).astype(f32)
    b2 = _pad_lanes(params["b2"][None, :]).astype(f32)

    kernel = functools.partial(_fused_disc_kernel, n=n, c1=c1)
    operands = (p1, mask1, w1m, g1, b1, w2m, g2, b2, mask2, w3m)
    out = pl.pallas_call(
        kernel,
        out_shape=jax.ShapeDtypeStruct((n, OC_PAD), jnp.float32),
        in_specs=[_full_spec(a.shape) for a in operands],
        out_specs=_full_spec((n, OC_PAD)),
        # TODO(synk): for large batches, tile the row (M) dimension with a grid:
        # phase 1 accumulates BN sum/sum-sq over an "arbitrary" reduction axis,
        # phase 2 normalizes/applies with the independent row axis marked
        # "parallel" so v7x's 2 TensorCores split it; re-derive tile sizes and
        # set vmem_limit_bytes against v7x's 64 MiB VMEM.  At batch=2 the whole
        # problem is <1 MiB and fits in a single block.
    )(*operands)
    return out[:, :1]


# -----------------------------------------------------------------------------
# References
# -----------------------------------------------------------------------------
def _ref_conv(x, w, stride, pad, precision=None):
    return jax.lax.conv_general_dilated(
        x, w, window_strides=(stride, stride),
        padding=[(pad, pad), (pad, pad)],
        dimension_numbers=("NCHW", "OIHW", "NCHW"),
        precision=precision, preferred_element_type=jnp.float32)


def _ref_bn_lrelu(z, gamma, beta):
    mean = jnp.mean(z, axis=(0, 2, 3), keepdims=True)
    var = jnp.mean((z - mean) ** 2, axis=(0, 2, 3), keepdims=True)
    y = (z - mean) * jax.lax.rsqrt(var + BN_EPS)
    y = y * gamma[None, :, None, None] + beta[None, :, None, None]
    return jnp.where(y > 0, y, NEG_SLOPE * y)


def reference_f32(x, p):
    hi = jax.lax.Precision.HIGHEST
    h = _ref_bn_lrelu(_ref_conv(x, p["w1"], 2, 1, hi), p["g1"], p["b1"])
    h = _ref_bn_lrelu(_ref_conv(h, p["w2"], 2, 1, hi), p["g2"], p["b2"])
    h = _ref_conv(h, p["w3"], 1, 0, hi)
    return h.reshape(h.shape[0], -1)


def reference_bf16_matched(x, p):
    """Same math as the kernel: bf16 matmul operands, f32 accumulation/BN."""
    bf = jnp.bfloat16
    hi = jax.lax.Precision.HIGHEST
    h = _ref_conv(x.astype(bf), p["w1"].astype(bf), 2, 1)
    h = _ref_bn_lrelu(h, p["g1"], p["b1"])
    h = _ref_conv(h.astype(bf), p["w2"].astype(bf), 2, 1)
    h = _ref_bn_lrelu(h, p["g2"], p["b2"])
    h = _ref_conv(h, p["w3"], 1, 0, hi)
    return h.reshape(h.shape[0], -1)


# -----------------------------------------------------------------------------
# Main
# -----------------------------------------------------------------------------
if __name__ == "__main__":
    input_dim = 4          # e.g. image channels + label channels
    hidden_dim = 16
    batch = 2
    spatial = 28           # 28 -> 14 -> 7 -> 1 (the final 7x7 valid conv needs 28x28)

    key = jax.random.PRNGKey(0)
    ks = jax.random.split(key, 8)
    params = {
        "w1": 0.05 * jax.random.normal(ks[0], (hidden_dim, input_dim, 4, 4), jnp.float32),
        "g1": 1.0 + 0.1 * jax.random.normal(ks[1], (hidden_dim,), jnp.float32),
        "b1": 0.1 * jax.random.normal(ks[2], (hidden_dim,), jnp.float32),
        "w2": 0.05 * jax.random.normal(ks[3], (hidden_dim * 2, hidden_dim, 4, 4), jnp.float32),
        "g2": 1.0 + 0.1 * jax.random.normal(ks[4], (hidden_dim * 2,), jnp.float32),
        "b2": 0.1 * jax.random.normal(ks[5], (hidden_dim * 2,), jnp.float32),
        "w3": 0.05 * jax.random.normal(ks[6], (1, hidden_dim * 2, 7, 7), jnp.float32),
    }
    x = jax.random.normal(ks[7], (batch, input_dim, spatial, spatial), jnp.float32)

    out = jax.block_until_ready(jax.jit(discriminator_forward)(x, params))
    assert out.shape == (batch, 1), f"unexpected output shape {out.shape}"

    ref_matched = reference_bf16_matched(x, params)
    ref_full = reference_f32(x, params)
    err_matched = float(jnp.max(jnp.abs(out - ref_matched)))
    err_full = float(jnp.max(jnp.abs(out - ref_full)))
    # bf16 MXU operands => near-exact agreement with the bf16-matched reference
    # (only f32 accumulation-order differences); agreement with the pure-f32
    # reference is at bf16 level.
    assert err_matched < 5e-3, f"mismatch vs bf16-matched reference: {err_matched}"
    assert err_full < 0.35, f"mismatch vs f32 reference: {err_full}"
    print("KERNEL_OK")
</pallas_src>

<mosaic_0001>
module attributes {stable_mosaic.version = 11 : i64} {
  func.func @_fused_disc_kernel(%arg0: memref<512x128xbf16, #tpu.memory_space<vmem>>, %arg1: memref<512x1xf32, #tpu.memory_space<vmem>>, %arg2: memref<128x128xbf16, #tpu.memory_space<vmem>>, %arg3: memref<1x128xf32, #tpu.memory_space<vmem>>, %arg4: memref<1x128xf32, #tpu.memory_space<vmem>>, %arg5: memref<256x128xbf16, #tpu.memory_space<vmem>>, %arg6: memref<1x128xf32, #tpu.memory_space<vmem>>, %arg7: memref<1x128xf32, #tpu.memory_space<vmem>>, %arg8: memref<112x1xf32, #tpu.memory_space<vmem>>, %arg9: memref<56x128xf32, #tpu.memory_space<vmem>>, %arg10: memref<2x128xf32, #tpu.memory_space<vmem>>) attributes {dimension_semantics = [], scalar_prefetch = 0 : i64, scratch_operands = 0 : i64, tpu.core_type = #tpu.core_type<tc>} {
    %c0 = arith.constant 0 : index
    %c0_0 = arith.constant 0 : index
    %0 = vector.load %arg1[%c0, %c0_0] : memref<512x1xf32, #tpu.memory_space<vmem>>, vector<512x1xf32>
    %c0_1 = arith.constant 0 : index
    %c0_2 = arith.constant 0 : index
    %1 = vector.load %arg8[%c0_1, %c0_2] : memref<112x1xf32, #tpu.memory_space<vmem>>, vector<112x1xf32>
    %c0_3 = arith.constant 0 : index
    %c0_4 = arith.constant 0 : index
    %2 = vector.load %arg0[%c0_3, %c0_4] : memref<512x128xbf16, #tpu.memory_space<vmem>>, vector<512x128xbf16>
    %c0_5 = arith.constant 0 : index
    %c0_6 = arith.constant 0 : index
    %3 = vector.load %arg2[%c0_5, %c0_6] : memref<128x128xbf16, #tpu.memory_space<vmem>>, vector<128x128xbf16>
    %cst = arith.constant dense<0.000000e+00> : vector<512x128xf32>
    %4 = tpu.matmul %2, %3, %cst {dimension_numbers = #tpu.dot_dimension_numbers<[1], [0], [0], [1], [0, 0, 1, 1], [], []>} : vector<512x128xbf16>, vector<128x128xbf16>, vector<512x128xf32> -> vector<512x128xf32>
    %5 = vector.broadcast %0 : vector<512x1xf32> to vector<512x128xf32>
    %6 = arith.mulf %4, %5 : vector<512x128xf32>
    %cst_7 = arith.constant dense<0.000000e+00> : vector<128xf32>
    %7 = vector.multi_reduction <add>, %6, %cst_7 [0] : vector<512x128xf32> to vector<128xf32>
    %8 = vector.shape_cast %7 : vector<128xf32> to vector<1x128xf32>
    %cst_8 = arith.constant 3.920000e+02 : f32
    %9 = vector.broadcast %cst_8 : f32 to vector<1x128xf32>
    %10 = arith.divf %8, %9 : vector<1x128xf32>
    %11 = vector.broadcast %10 : vector<1x128xf32> to vector<512x128xf32>
    %12 = arith.subf %4, %11 : vector<512x128xf32>
    %13 = vector.broadcast %0 : vector<512x1xf32> to vector<512x128xf32>
    %14 = arith.mulf %12, %13 : vector<512x128xf32>
    %15 = arith.mulf %14, %14 : vector<512x128xf32>
    %cst_9 = arith.constant dense<0.000000e+00> : vector<128xf32>
    %16 = vector.multi_reduction <add>, %15, %cst_9 [0] : vector<512x128xf32> to vector<128xf32>
    %17 = vector.shape_cast %16 : vector<128xf32> to vector<1x128xf32>
    %cst_10 = arith.constant 3.920000e+02 : f32
    %18 = vector.broadcast %cst_10 : f32 to vector<1x128xf32>
    %19 = arith.divf %17, %18 : vector<1x128xf32>
    %cst_11 = arith.constant 0.000000e+00 : f32
    %20 = vector.broadcast %cst_11 : f32 to vector<1x128xf32>
    %21 = arith.maximumf %19, %20 : vector<1x128xf32>
    %c0_12 = arith.constant 0 : index
    %c0_13 = arith.constant 0 : index
    %22 = vector.load %arg3[%c0_12, %c0_13] : memref<1x128xf32, #tpu.memory_space<vmem>>, vector<1x128xf32>
    %c0_14 = arith.constant 0 : index
    %c0_15 = arith.constant 0 : index
    %23 = vector.load %arg4[%c0_14, %c0_15] : memref<1x128xf32, #tpu.memory_space<vmem>>, vector<1x128xf32>
    %cst_16 = arith.constant 9.99999974E-6 : f32
    %24 = vector.broadcast %cst_16 : f32 to vector<1x128xf32>
    %25 = arith.addf %21, %24 : vector<1x128xf32>
    %26 = math.rsqrt %25 : vector<1x128xf32>
    %27 = vector.broadcast %26 : vector<1x128xf32> to vector<512x128xf32>
    %28 = arith.mulf %14, %27 : vector<512x128xf32>
    %29 = vector.broadcast %22 : vector<1x128xf32> to vector<512x128xf32>
    %30 = arith.mulf %28, %29 : vector<512x128xf32>
    %31 = vector.broadcast %23 : vector<1x128xf32> to vector<512x128xf32>
    %32 = arith.addf %30, %31 : vector<512x128xf32>
    %cst_17 = arith.constant 0.000000e+00 : f32
    %33 = vector.broadcast %cst_17 : f32 to vector<512x128xf32>
    %34 = arith.cmpf ogt, %32, %33 : vector<512x128xf32>
    %cst_18 = arith.constant 2.000000e-01 : f32
    %35 = vector.broadcast %cst_18 : f32 to vector<512x128xf32>
    %36 = arith.mulf %35, %32 : vector<512x128xf32>
    %37 = arith.select %34, %32, %36 : vector<512x128xi1>, vector<512x128xf32>
    %38 = vector.broadcast %0 : vector<512x1xf32> to vector<512x128xf32>
    %39 = arith.mulf %37, %38 : vector<512x128xf32>
    %40 = vector.shape_cast %39 : vector<512x128xf32> to vector<2x2x8x2x8x128xf32>
    %cst_19 = arith.constant 0.000000e+00 : f32
    %41 = vector.broadcast %cst_19 : f32 to vector<2x7x1x16xf32>
    %42 = vector.extract_strided_slice %40 {offsets = [0, 0, 0, 0, 0, 0], sizes = [2, 1, 7, 1, 8, 16], strides = [1, 1, 1, 1, 1, 1]} : vector<2x2x8x2x8x128xf32> to vector<2x1x7x1x8x16xf32>
    %43 = vector.shape_cast %42 : vector<2x1x7x1x8x16xf32> to vector<2x7x8x16xf32>
    %44 = vector.extract_strided_slice %40 {offsets = [0, 0, 0, 1, 0, 0], sizes = [2, 1, 7, 1, 8, 16], strides = [1, 1, 1, 1, 1, 1]} : vector<2x2x8x2x8x128xf32> to vector<2x1x7x1x8x16xf32>
    %45 = vector.shape_cast %44 : vector<2x1x7x1x8x16xf32> to vector<2x7x8x16xf32>
    %46 = vector.extract_strided_slice %40 {offsets = [0, 0, 0, 0, 0, 0], sizes = [2, 1, 7, 1, 8, 16], strides = [1, 1, 1, 1, 1, 1]} : vector<2x2x8x2x8x128xf32> to vector<2x1x7x1x8x16xf32>
    %47 = vector.shape_cast %46 : vector<2x1x7x1x8x16xf32> to vector<2x7x8x16xf32>
    %48 = vector.extract_strided_slice %47 {offsets = [0, 0, 1, 0], sizes = [2, 7, 7, 16], strides = [1, 1, 1, 1]} : vector<2x7x8x16xf32> to vector<2x7x7x16xf32>
    %49 = tpu.concatenate %48, %41 in 2 : vector<2x7x7x16xf32>, vector<2x7x1x16xf32> -> vector<2x7x8x16xf32>
    %50 = vector.extract_strided_slice %40 {offsets = [0, 0, 0, 1, 0, 0], sizes = [2, 1, 7, 1, 8, 16], strides = [1, 1, 1, 1, 1, 1]} : vector<2x2x8x2x8x128xf32> to vector<2x1x7x1x8x16xf32>
    %51 = vector.shape_cast %50 : vector<2x1x7x1x8x16xf32> to vector<2x7x8x16xf32>
    %52 = vector.extract_strided_slice %51 {offsets = [0, 0, 1, 0], sizes = [2, 7, 7, 16], strides = [1, 1, 1, 1]} : vector<2x7x8x16xf32> to vector<2x7x7x16xf32>
    %53 = tpu.concatenate %52, %41 in 2 : vector<2x7x7x16xf32>, vector<2x7x1x16xf32> -> vector<2x7x8x16xf32>
    %54 = vector.extract_strided_slice %40 {offsets = [0, 1, 0, 0, 0, 0], sizes = [2, 1, 7, 1, 8, 16], strides = [1, 1, 1, 1, 1, 1]} : vector<2x2x8x2x8x128xf32> to vector<2x1x7x1x8x16xf32>
    %55 = vector.shape_cast %54 : vector<2x1x7x1x8x16xf32> to vector<2x7x8x16xf32>
    %56 = vector.extract_strided_slice %40 {offsets = [0, 1, 0, 1, 0, 0], sizes = [2, 1, 7, 1, 8, 16], strides = [1, 1, 1, 1, 1, 1]} : vector<2x2x8x2x8x128xf32> to vector<2x1x7x1x8x16xf32>
    %57 = vector.shape_cast %56 : vector<2x1x7x1x8x16xf32> to vector<2x7x8x16xf32>
    %58 = vector.extract_strided_slice %40 {offsets = [0, 1, 0, 0, 0, 0], sizes = [2, 1, 7, 1, 8, 16], strides = [1, 1, 1, 1, 1, 1]} : vector<2x2x8x2x8x128xf32> to vector<2x1x7x1x8x16xf32>
    %59 = vector.shape_cast %58 : vector<2x1x7x1x8x16xf32> to vector<2x7x8x16xf32>
    %60 = vector.extract_strided_slice %59 {offsets = [0, 0, 1, 0], sizes = [2, 7, 7, 16], strides = [1, 1, 1, 1]} : vector<2x7x8x16xf32> to vector<2x7x7x16xf32>
    %61 = tpu.concatenate %60, %41 in 2 : vector<2x7x7x16xf32>, vector<2x7x1x16xf32> -> vector<2x7x8x16xf32>
    %62 = vector.extract_strided_slice %40 {offsets = [0, 1, 0, 1, 0, 0], sizes = [2, 1, 7, 1, 8, 16], strides = [1, 1, 1, 1, 1, 1]} : vector<2x2x8x2x8x128xf32> to vector<2x1x7x1x8x16xf32>
    %63 = vector.shape_cast %62 : vector<2x1x7x1x8x16xf32> to vector<2x7x8x16xf32>
    %64 = vector.extract_strided_slice %63 {offsets = [0, 0, 1, 0], sizes = [2, 7, 7, 16], strides = [1, 1, 1, 1]} : vector<2x7x8x16xf32> to vector<2x7x7x16xf32>
    %65 = tpu.concatenate %64, %41 in 2 : vector<2x7x7x16xf32>, vector<2x7x1x16xf32> -> vector<2x7x8x16xf32>
    %66 = vector.extract_strided_slice %40 {offsets = [0, 0, 1, 0, 0, 0], sizes = [2, 1, 7, 1, 8, 16], strides = [1, 1, 1, 1, 1, 1]} : vector<2x2x8x2x8x128xf32> to vector<2x1x7x1x8x16xf32>
    %67 = vector.shape_cast %66 : vector<2x1x7x1x8x16xf32> to vector<2x7x8x16xf32>
    %68 = vector.extract_strided_slice %40 {offsets = [0, 0, 1, 1, 0, 0], sizes = [2, 1, 7, 1, 8, 16], strides = [1, 1, 1, 1, 1, 1]} : vector<2x2x8x2x8x128xf32> to vector<2x1x7x1x8x16xf32>
    %69 = vector.shape_cast %68 : vector<2x1x7x1x8x16xf32> to vector<2x7x8x16xf32>
    %70 = vector.extract_strided_slice %40 {offsets = [0, 0, 1, 0, 0, 0], sizes = [2, 1, 7, 1, 8, 16], strides = [1, 1, 1, 1, 1, 1]} : vector<2x2x8x2x8x128xf32> to vector<2x1x7x1x8x16xf32>
    %71 = vector.shape_cast %70 : vector<2x1x7x1x8x16xf32> to vector<2x7x8x16xf32>
    %72 = vector.extract_strided_slice %71 {offsets = [0, 0, 1, 0], sizes = [2, 7, 7, 16], strides = [1, 1, 1, 1]} : vector<2x7x8x16xf32> to vector<2x7x7x16xf32>
    %73 = tpu.concatenate %72, %41 in 2 : vector<2x7x7x16xf32>, vector<2x7x1x16xf32> -> vector<2x7x8x16xf32>
    %74 = vector.extract_strided_slice %40 {offsets = [0, 0, 1, 1, 0, 0], sizes = [2, 1, 7, 1, 8, 16], strides = [1, 1, 1, 1, 1, 1]} : vector<2x2x8x2x8x128xf32> to vector<2x1x7x1x8x16xf32>
    %75 = vector.shape_cast %74 : vector<2x1x7x1x8x16xf32> to vector<2x7x8x16xf32>
    %76 = vector.extract_strided_slice %75 {offsets = [0, 0, 1, 0], sizes = [2, 7, 7, 16], strides = [1, 1, 1, 1]} : vector<2x7x8x16xf32> to vector<2x7x7x16xf32>
    %77 = tpu.concatenate %76, %41 in 2 : vector<2x7x7x16xf32>, vector<2x7x1x16xf32> -> vector<2x7x8x16xf32>
    %78 = vector.extract_strided_slice %40 {offsets = [0, 1, 1, 0, 0, 0], sizes = [2, 1, 7, 1, 8, 16], strides = [1, 1, 1, 1, 1, 1]} : vector<2x2x8x2x8x128xf32> to vector<2x1x7x1x8x16xf32>
    %79 = vector.shape_cast %78 : vector<2x1x7x1x8x16xf32> to vector<2x7x8x16xf32>
    %80 = vector.extract_strided_slice %40 {offsets = [0, 1, 1, 1, 0, 0], sizes = [2, 1, 7, 1, 8, 16], strides = [1, 1, 1, 1, 1, 1]} : vector<2x2x8x2x8x128xf32> to vector<2x1x7x1x8x16xf32>
    %81 = vector.shape_cast %80 : vector<2x1x7x1x8x16xf32> to vector<2x7x8x16xf32>
    %82 = vector.extract_strided_slice %40 {offsets = [0, 1, 1, 0, 0, 0], sizes = [2, 1, 7, 1, 8, 16], strides = [1, 1, 1, 1, 1, 1]} : vector<2x2x8x2x8x128xf32> to vector<2x1x7x1x8x16xf32>
    %83 = vector.shape_cast %82 : vector<2x1x7x1x8x16xf32> to vector<2x7x8x16xf32>
    %84 = vector.extract_strided_slice %83 {offsets = [0, 0, 1, 0], sizes = [2, 7, 7, 16], strides = [1, 1, 1, 1]} : vector<2x7x8x16xf32> to vector<2x7x7x16xf32>
    %85 = tpu.concatenate %84, %41 in 2 : vector<2x7x7x16xf32>, vector<2x7x1x16xf32> -> vector<2x7x8x16xf32>
    %86 = vector.extract_strided_slice %40 {offsets = [0, 1, 1, 1, 0, 0], sizes = [2, 1, 7, 1, 8, 16], strides = [1, 1, 1, 1, 1, 1]} : vector<2x2x8x2x8x128xf32> to vector<2x1x7x1x8x16xf32>
    %87 = vector.shape_cast %86 : vector<2x1x7x1x8x16xf32> to vector<2x7x8x16xf32>
    %88 = vector.extract_strided_slice %87 {offsets = [0, 0, 1, 0], sizes = [2, 7, 7, 16], strides = [1, 1, 1, 1]} : vector<2x7x8x16xf32> to vector<2x7x7x16xf32>
    %89 = tpu.concatenate %88, %41 in 2 : vector<2x7x7x16xf32>, vector<2x7x1x16xf32> -> vector<2x7x8x16xf32>
    %90 = tpu.concatenate %43, %45, %49, %53, %55, %57, %61, %65, %67, %69, %73, %77, %79, %81, %85, %89 in 3 : vector<2x7x8x16xf32>, vector<2x7x8x16xf32>, vector<2x7x8x16xf32>, vector<2x7x8x16xf32>, vector<2x7x8x16xf32>, vector<2x7x8x16xf32>, vector<2x7x8x16xf32>, vector<2x7x8x16xf32>, vector<2x7x8x16xf32>, vector<2x7x8x16xf32>, vector<2x7x8x16xf32>, vector<2x7x8x16xf32>, vector<2x7x8x16xf32>, vector<2x7x8x16xf32>, vector<2x7x8x16xf32>, vector<2x7x8x16xf32> -> vector<2x7x8x256xf32>
    %91 = vector.shape_cast %90 : vector<2x7x8x256xf32> to vector<112x256xf32>
    %92 = arith.truncf %91 : vector<112x256xf32> to vector<112x256xbf16>
    %c0_20 = arith.constant 0 : index
    %c0_21 = arith.constant 0 : index
    %93 = vector.load %arg5[%c0_20, %c0_21] : memref<256x128xbf16, #tpu.memory_space<vmem>>, vector<256x128xbf16>
    %cst_22 = arith.constant dense<0.000000e+00> : vector<112x128xf32>
    %94 = tpu.matmul %92, %93, %cst_22 {dimension_numbers = #tpu.dot_dimension_numbers<[1], [0], [0], [1], [0, 0, 1, 1], [], []>} : vector<112x256xbf16>, vector<256x128xbf16>, vector<112x128xf32> -> vector<112x128xf32>
    %95 = vector.broadcast %1 : vector<112x1xf32> to vector<112x128xf32>
    %96 = arith.mulf %94, %95 : vector<112x128xf32>
    %cst_23 = arith.constant dense<0.000000e+00> : vector<128xf32>
    %97 = vector.multi_reduction <add>, %96, %cst_23 [0] : vector<112x128xf32> to vector<128xf32>
    %98 = vector.shape_cast %97 : vector<128xf32> to vector<1x128xf32>
    %cst_24 = arith.constant 9.800000e+01 : f32
    %99 = vector.broadcast %cst_24 : f32 to vector<1x128xf32>
    %100 = arith.divf %98, %99 : vector<1x128xf32>
    %101 = vector.broadcast %100 : vector<1x128xf32> to vector<112x128xf32>
    %102 = arith.subf %94, %101 : vector<112x128xf32>
    %103 = vector.broadcast %1 : vector<112x1xf32> to vector<112x128xf32>
    %104 = arith.mulf %102, %103 : vector<112x128xf32>
    %105 = arith.mulf %104, %104 : vector<112x128xf32>
    %cst_25 = arith.constant dense<0.000000e+00> : vector<128xf32>
    %106 = vector.multi_reduction <add>, %105, %cst_25 [0] : vector<112x128xf32> to vector<128xf32>
    %107 = vector.shape_cast %106 : vector<128xf32> to vector<1x128xf32>
    %cst_26 = arith.constant 9.800000e+01 : f32
    %108 = vector.broadcast %cst_26 : f32 to vector<1x128xf32>
    %109 = arith.divf %107, %108 : vector<1x128xf32>
    %cst_27 = arith.constant 0.000000e+00 : f32
    %110 = vector.broadcast %cst_27 : f32 to vector<1x128xf32>
    %111 = arith.maximumf %109, %110 : vector<1x128xf32>
    %c0_28 = arith.constant 0 : index
    %c0_29 = arith.constant 0 : index
    %112 = vector.load %arg6[%c0_28, %c0_29] : memref<1x128xf32, #tpu.memory_space<vmem>>, vector<1x128xf32>
    %c0_30 = arith.constant 0 : index
    %c0_31 = arith.constant 0 : index
    %113 = vector.load %arg7[%c0_30, %c0_31] : memref<1x128xf32, #tpu.memory_space<vmem>>, vector<1x128xf32>
    %cst_32 = arith.constant 9.99999974E-6 : f32
    %114 = vector.broadcast %cst_32 : f32 to vector<1x128xf32>
    %115 = arith.addf %111, %114 : vector<1x128xf32>
    %116 = math.rsqrt %115 : vector<1x128xf32>
    %117 = vector.broadcast %116 : vector<1x128xf32> to vector<112x128xf32>
    %118 = arith.mulf %104, %117 : vector<112x128xf32>
    %119 = vector.broadcast %112 : vector<1x128xf32> to vector<112x128xf32>
    %120 = arith.mulf %118, %119 : vector<112x128xf32>
    %121 = vector.broadcast %113 : vector<1x128xf32> to vector<112x128xf32>
    %122 = arith.addf %120, %121 : vector<112x128xf32>
    %cst_33 = arith.constant 0.000000e+00 : f32
    %123 = vector.broadcast %cst_33 : f32 to vector<112x128xf32>
    %124 = arith.cmpf ogt, %122, %123 : vector<112x128xf32>
    %cst_34 = arith.constant 2.000000e-01 : f32
    %125 = vector.broadcast %cst_34 : f32 to vector<112x128xf32>
    %126 = arith.mulf %125, %122 : vector<112x128xf32>
    %127 = arith.select %124, %122, %126 : vector<112x128xi1>, vector<112x128xf32>
    %128 = vector.shape_cast %127 : vector<112x128xf32> to vector<2x56x128xf32>
    %c0_35 = arith.constant 0 : index
    %c0_36 = arith.constant 0 : index
    %129 = vector.load %arg9[%c0_35, %c0_36] : memref<56x128xf32, #tpu.memory_space<vmem>>, vector<56x128xf32>
    %130 = vector.shape_cast %129 : vector<56x128xf32> to vector<1x56x128xf32>
    %131 = vector.broadcast %130 : vector<1x56x128xf32> to vector<2x56x128xf32>
    %132 = arith.mulf %128, %131 : vector<2x56x128xf32>
    %cst_37 = arith.constant dense<0.000000e+00> : vector<2x56xf32>
    %133 = vector.multi_reduction <add>, %132, %cst_37 [2] : vector<2x56x128xf32> to vector<2x56xf32>
    %134 = vector.shape_cast %133 : vector<2x56xf32> to vector<2x56x1xf32>
    %cst_38 = arith.constant dense<0.000000e+00> : vector<2x1xf32>
    %135 = vector.multi_reduction <add>, %134, %cst_38 [1] : vector<2x56x1xf32> to vector<2x1xf32>
    %136 = vector.shape_cast %135 : vector<2x1xf32> to vector<2x1xf32>
    %137 = vector.broadcast %136 : vector<2x1xf32> to vector<2x128xf32>
    %c0_39 = arith.constant 0 : index
    %c0_40 = arith.constant 0 : index
    %138 = vector.load %arg10[%c0_39, %c0_40] : memref<2x128xf32, #tpu.memory_space<vmem>>, vector<2x128xf32>
    tpu.vector_store %arg10[%c0_39, %c0_40], %137 {strides = array<i32>} : memref<2x128xf32, #tpu.memory_space<vmem>>, vector<2x128xf32>,
    return
  }
}

</mosaic_0001>

<llo_original>
// kernel: discriminator_forward.1
$region0: #{discriminator_forward.1}
  #allocation0 [shape = 'u32[]', space=smem, size = 0x4, offset = 0x4, fixed_abs, tag = 'smem constant byte address 0x4 - core index']
  #allocation1 [shape = 'u32[144,128]{1,0:T(1,128)}', space=vmem, size = 0x12000, scoped, tag = 'internal scratch']
  %s0 = inlined_call_operand.vmem [shape: bf16[512,128], index: 0, kind: input, shape index: {}]
  %s1 = inlined_call_operand.vmem [shape: f32[512,1], index: 1, kind: input, shape index: {}]
  %s2 = inlined_call_operand.vmem [shape: bf16[128,128], index: 2, kind: input, shape index: {}]
  %s3 = inlined_call_operand.vmem [shape: f32[1,128], index: 3, kind: input, shape index: {}]
  %s4 = inlined_call_operand.vmem [shape: f32[1,128], index: 4, kind: input, shape index: {}]
  %s5 = inlined_call_operand.vmem [shape: bf16[256,128], index: 5, kind: input, shape index: {}]
  %s6 = inlined_call_operand.vmem [shape: f32[1,128], index: 6, kind: input, shape index: {}]
  %s7 = inlined_call_operand.vmem [shape: f32[1,128], index: 7, kind: input, shape index: {}]
  %s8 = inlined_call_operand.vmem [shape: f32[112,1], index: 8, kind: input, shape index: {}]
  %s9 = inlined_call_operand.vmem [shape: f32[56,128], index: 9, kind: input, shape index: {}]
  %s10 = inlined_call_operand.vmem [shape: f32[2,128], index: 10, kind: output, shape index: {}]
  %s11 = sld [smem:[#allocation0]]
  $region50: #{discriminator_forward.1} parent=0
    _
  %s13 = ssub.s32 1, %s11
  %s14 = scalar_select 0, %s13, %s11
  // Predicated region
  $region2: #{discriminator_forward.1} parent=0 // pred_check
    _
  $region3: #{discriminator_forward.1} parent=0 // pred_check_branch
    %16 = sbr.rel (0) target = $region5
  $region4: #{discriminator_forward.1} parent=0 // pred_region
    _
  $region5: #{discriminator_forward.1} parent=0 // pred_fallthru
    _
  // Predicated region
  $region6: #{discriminator_forward.1} parent=0 // pred_check
    _
  $region7: #{discriminator_forward.1} parent=0 // pred_check_branch
    %18 = sbr.rel (0) target = $region9
  $region8: #{discriminator_forward.1} parent=0 // pred_region
    _
  $region9: #{discriminator_forward.1} parent=0 // pred_fallthru
    _
  // Predicated region
  $region10: #{discriminator_forward.1} parent=0 // pred_check
    _
  $region11: #{discriminator_forward.1} parent=0 // pred_check_branch
    %20 = sbr.rel (0) target = $region13
  $region12: #{discriminator_forward.1} parent=0 // pred_region
    _
  $region13: #{discriminator_forward.1} parent=0 // pred_fallthru
    _
  // Predicated region
  $region14: #{discriminator_forward.1} parent=0 // pred_check
    _
  $region15: #{discriminator_forward.1} parent=0 // pred_check_branch
    %22 = sbr.rel (0) target = $region17
  $region16: #{discriminator_forward.1} parent=0 // pred_region
    _
  $region17: #{discriminator_forward.1} parent=0 // pred_fallthru
    _
  // Predicated region
  $region18: #{discriminator_forward.1} parent=0 // pred_check
    _
  $region19: #{discriminator_forward.1} parent=0 // pred_check_branch
    %24 = sbr.rel (0) target = $region21
  $region20: #{discriminator_forward.1} parent=0 // pred_region
    _
  $region21: #{discriminator_forward.1} parent=0 // pred_fallthru
    _
  // Predicated region
  $region22: #{discriminator_forward.1} parent=0 // pred_check
    _
  $region23: #{discriminator_forward.1} parent=0 // pred_check_branch
    %26 = sbr.rel (0) target = $region25
  $region24: #{discriminator_forward.1} parent=0 // pred_region
    _
  $region25: #{discriminator_forward.1} parent=0 // pred_fallthru
    _
  // Predicated region
  $region26: #{discriminator_forward.1} parent=0 // pred_check
    _
  $region27: #{discriminator_forward.1} parent=0 // pred_check_branch
    %28 = sbr.rel (0) target = $region29
  $region28: #{discriminator_forward.1} parent=0 // pred_region
    _
  $region29: #{discriminator_forward.1} parent=0 // pred_fallthru
    _
  // Predicated region
  $region30: #{discriminator_forward.1} parent=0 // pred_check
    _
  $region31: #{discriminator_forward.1} parent=0 // pred_check_branch
    %30 = sbr.rel (0) target = $region33
  $region32: #{discriminator_forward.1} parent=0 // pred_region
    _
  $region33: #{discriminator_forward.1} parent=0 // pred_fallthru
    _
  // Predicated region
  $region34: #{discriminator_forward.1} parent=0 // pred_check
    _
  $region35: #{discriminator_forward.1} parent=0 // pred_check_branch
    %32 = sbr.rel (0) target = $region37
  $region36: #{discriminator_forward.1} parent=0 // pred_region
    _
  $region37: #{discriminator_forward.1} parent=0 // pred_fallthru
    _
  // Predicated region
  $region38: #{discriminator_forward.1} parent=0 // pred_check
    _
  $region39: #{discriminator_forward.1} parent=0 // pred_check_branch
    %34 = sbr.rel (0) target = $region41
  $region40: #{discriminator_forward.1} parent=0 // pred_region
    _
  $region41: #{discriminator_forward.1} parent=0 // pred_fallthru
    _
  %v36 = vld [vmem:[%s1] sm:$0xff]
  %v37 = vld [vmem:[%s1 + $0x8] sm:$0xff]
  %v38 = vld [vmem:[%s1 + $0x10] sm:$0xff]
  %v39 = vld [vmem:[%s1 + $0x18] sm:$0xff]
  %v40 = vld [vmem:[%s1 + $0x20] sm:$0xff]
  %v41 = vld [vmem:[%s1 + $0x28] sm:$0xff]
  %v42 = vld [vmem:[%s1 + $0x30] sm:$0xff]
  %v43 = vld [vmem:[%s1 + $0x38] sm:$0xff]
  %v44 = vld [vmem:[%s1 + $0x40] sm:$0xff]
  %v45 = vld [vmem:[%s1 + $0x48] sm:$0xff]
  %v46 = vld [vmem:[%s1 + $0x50] sm:$0xff]
  %v47 = vld [vmem:[%s1 + $0x58] sm:$0xff]
  %v48 = vld [vmem:[%s1 + $0x60] sm:$0xff]
  %v49 = vld [vmem:[%s1 + $0x68] sm:$0xff]
  %v50 = vld [vmem:[%s1 + $0x70] sm:$0xff]
  %v51 = vld [vmem:[%s1 + $0x78] sm:$0xff]
  %v52 = vld [vmem:[%s1 + $0x80] sm:$0xff]
  %v53 = vld [vmem:[%s1 + $0x88] sm:$0xff]
  %v54 = vld [vmem:[%s1 + $0x90] sm:$0xff]
  %v55 = vld [vmem:[%s1 + $0x98] sm:$0xff]
  %v56 = vld [vmem:[%s1 + $0xa0] sm:$0xff]
  %v57 = vld [vmem:[%s1 + $0xa8] sm:$0xff]
  %v58 = vld [vmem:[%s1 + $0xb0] sm:$0xff]
  %v59 = vld [vmem:[%s1 + $0xb8] sm:$0xff]
  %v60 = vld [vmem:[%s1 + $0xc0] sm:$0xff]
  %v61 = vld [vmem:[%s1 + $0xc8] sm:$0xff]
  %v62 = vld [vmem:[%s1 + $0xd0] sm:$0xff]
  %v63 = vld [vmem:[%s1 + $0xd8] sm:$0xff]
  %v64 = vld [vmem:[%s1 + $0xe0] sm:$0xff]
  %v65 = vld [vmem:[%s1 + $0xe8] sm:$0xff]
  %v66 = vld [vmem:[%s1 + $0xf0] sm:$0xff]
  %v67 = vld [vmem:[%s1 + $0xf8] sm:$0xff]
  %v68 = vld [vmem:[%s1 + $0x100] sm:$0xff]
  %v69 = vld [vmem:[%s1 + $0x108] sm:$0xff]
  %v70 = vld [vmem:[%s1 + $0x110] sm:$0xff]
  %v71 = vld [vmem:[%s1 + $0x118] sm:$0xff]
  %v72 = vld [vmem:[%s1 + $0x120] sm:$0xff]
  %v73 = vld [vmem:[%s1 + $0x128] sm:$0xff]
  %v74 = vld [vmem:[%s1 + $0x130] sm:$0xff]
  %v75 = vld [vmem:[%s1 + $0x138] sm:$0xff]
  %v76 = vld [vmem:[%s1 + $0x140] sm:$0xff]
  %v77 = vld [vmem:[%s1 + $0x148] sm:$0xff]
  %v78 = vld [vmem:[%s1 + $0x150] sm:$0xff]
  %v79 = vld [vmem:[%s1 + $0x158] sm:$0xff]
  %v80 = vld [vmem:[%s1 + $0x160] sm:$0xff]
  %v81 = vld [vmem:[%s1 + $0x168] sm:$0xff]
  %v82 = vld [vmem:[%s1 + $0x170] sm:$0xff]
  %v83 = vld [vmem:[%s1 + $0x178] sm:$0xff]
  %v84 = vld [vmem:[%s1 + $0x180] sm:$0xff]
  %v85 = vld [vmem:[%s1 + $0x188] sm:$0xff]
  %v86 = vld [vmem:[%s1 + $0x190] sm:$0xff]
  %v87 = vld [vmem:[%s1 + $0x198] sm:$0xff]
  %v88 = vld [vmem:[%s1 + $0x1a0] sm:$0xff]
  %v89 = vld [vmem:[%s1 + $0x1a8] sm:$0xff]
  %v90 = vld [vmem:[%s1 + $0x1b0] sm:$0xff]
  %v91 = vld [vmem:[%s1 + $0x1b8] sm:$0xff]
  %v92 = vld [vmem:[%s1 + $0x1c0] sm:$0xff]
  %v93 = vld [vmem:[%s1 + $0x1c8] sm:$0xff]
  %v94 = vld [vmem:[%s1 + $0x1d0] sm:$0xff]
  %v95 = vld [vmem:[%s1 + $0x1d8] sm:$0xff]
  %v96 = vld [vmem:[%s1 + $0x1e0] sm:$0xff]
  %v97 = vld [vmem:[%s1 + $0x1e8] sm:$0xff]
  %v98 = vld [vmem:[%s1 + $0x1f0] sm:$0xff]
  %v99 = vld [vmem:[%s1 + $0x1f8] sm:$0xff]
  %v100 = vld [vmem:[%s8] sm:$0xff]
  %v101 = vld [vmem:[%s8 + $0x8] sm:$0xff]
  %v102 = vld [vmem:[%s8 + $0x10] sm:$0xff]
  %v103 = vld [vmem:[%s8 + $0x18] sm:$0xff]
  %v104 = vld [vmem:[%s8 + $0x20] sm:$0xff]
  %v105 = vld [vmem:[%s8 + $0x28] sm:$0xff]
  %v106 = vld [vmem:[%s8 + $0x30] sm:$0xff]
  %v107 = vld [vmem:[%s8 + $0x38] sm:$0xff]
  %v108 = vld [vmem:[%s8 + $0x40] sm:$0xff]
  %v109 = vld [vmem:[%s8 + $0x48] sm:$0xff]
  %v110 = vld [vmem:[%s8 + $0x50] sm:$0xff]
  %v111 = vld [vmem:[%s8 + $0x58] sm:$0xff]
  %v112 = vld [vmem:[%s8 + $0x60] sm:$0xff]
  %v113 = vld [vmem:[%s8 + $0x68] sm:$0xff]
  %v114 = vld [vmem:[%s0] sm:$0xf]
  %v115 = vld [vmem:[%s0 + $0x4] sm:$0xf]
  %v116 = vld [vmem:[%s0 + $0x8] sm:$0xf]
  %v117 = vld [vmem:[%s0 + $0xc] sm:$0xf]
  %v118 = vld [vmem:[%s0 + $0x10] sm:$0xf]
  %v119 = vld [vmem:[%s0 + $0x14] sm:$0xf]
  %v120 = vld [vmem:[%s0 + $0x18] sm:$0xf]
  %v121 = vld [vmem:[%s0 + $0x1c] sm:$0xf]
  %v122 = vld [vmem:[%s0 + $0x20] sm:$0xf]
  %v123 = vld [vmem:[%s0 + $0x24] sm:$0xf]
  %v124 = vld [vmem:[%s0 + $0x28] sm:$0xf]
  %v125 = vld [vmem:[%s0 + $0x2c] sm:$0xf]
  %v126 = vld [vmem:[%s0 + $0x30] sm:$0xf]
  %v127 = vld [vmem:[%s0 + $0x34] sm:$0xf]
  %v128 = vld [vmem:[%s0 + $0x38] sm:$0xf]
  %v129 = vld [vmem:[%s0 + $0x3c] sm:$0xf]
  %v130 = vld [vmem:[%s0 + $0x40] sm:$0xf]
  %v131 = vld [vmem:[%s0 + $0x44] sm:$0xf]
  %v132 = vld [vmem:[%s0 + $0x48] sm:$0xf]
  %v133 = vld [vmem:[%s0 + $0x4c] sm:$0xf]
  %v134 = vld [vmem:[%s0 + $0x50] sm:$0xf]
  %v135 = vld [vmem:[%s0 + $0x54] sm:$0xf]
  %v136 = vld [vmem:[%s0 + $0x58] sm:$0xf]
  %v137 = vld [vmem:[%s0 + $0x5c] sm:$0xf]
  %v138 = vld [vmem:[%s0 + $0x60] sm:$0xf]
  %v139 = vld [vmem:[%s0 + $0x64] sm:$0xf]
  %v140 = vld [vmem:[%s0 + $0x68] sm:$0xf]
  %v141 = vld [vmem:[%s0 + $0x6c] sm:$0xf]
  %v142 = vld [vmem:[%s0 + $0x70] sm:$0xf]
  %v143 = vld [vmem:[%s0 + $0x74] sm:$0xf]
  %v144 = vld [vmem:[%s0 + $0x78] sm:$0xf]
  %v145 = vld [vmem:[%s0 + $0x7c] sm:$0xf]
  %v146 = vld [vmem:[%s0 + $0x80] sm:$0xf]
  %v147 = vld [vmem:[%s0 + $0x84] sm:$0xf]
  %v148 = vld [vmem:[%s0 + $0x88] sm:$0xf]
  %v149 = vld [vmem:[%s0 + $0x8c] sm:$0xf]
  %v150 = vld [vmem:[%s0 + $0x90] sm:$0xf]
  %v151 = vld [vmem:[%s0 + $0x94] sm:$0xf]
  %v152 = vld [vmem:[%s0 + $0x98] sm:$0xf]
  %v153 = vld [vmem:[%s0 + $0x9c] sm:$0xf]
  %v154 = vld [vmem:[%s0 + $0xa0] sm:$0xf]
  %v155 = vld [vmem:[%s0 + $0xa4] sm:$0xf]
  %v156 = vld [vmem:[%s0 + $0xa8] sm:$0xf]
  %v157 = vld [vmem:[%s0 + $0xac] sm:$0xf]
  %v158 = vld [vmem:[%s0 + $0xb0] sm:$0xf]
  %v159 = vld [vmem:[%s0 + $0xb4] sm:$0xf]
  %v160 = vld [vmem:[%s0 + $0xb8] sm:$0xf]
  %v161 = vld [vmem:[%s0 + $0xbc] sm:$0xf]
  %v162 = vld [vmem:[%s0 + $0xc0] sm:$0xf]
  %v163 = vld [vmem:[%s0 + $0xc4] sm:$0xf]
  %v164 = vld [vmem:[%s0 + $0xc8] sm:$0xf]
  %v165 = vld [vmem:[%s0 + $0xcc] sm:$0xf]
  %v166 = vld [vmem:[%s0 + $0xd0] sm:$0xf]
  %v167 = vld [vmem:[%s0 + $0xd4] sm:$0xf]
  %v168 = vld [vmem:[%s0 + $0xd8] sm:$0xf]
  %v169 = vld [vmem:[%s0 + $0xdc] sm:$0xf]
  %v170 = vld [vmem:[%s0 + $0xe0] sm:$0xf]
  %v171 = vld [vmem:[%s0 + $0xe4] sm:$0xf]
  %v172 = vld [vmem:[%s0 + $0xe8] sm:$0xf]
  %v173 = vld [vmem:[%s0 + $0xec] sm:$0xf]
  %v174 = vld [vmem:[%s0 + $0xf0] sm:$0xf]
  %v175 = vld [vmem:[%s0 + $0xf4] sm:$0xf]
  %v176 = vld [vmem:[%s0 + $0xf8] sm:$0xf]
  %v177 = vld [vmem:[%s0 + $0xfc] sm:$0xf]
  %v178 = vld [vmem:[%s2] sm:$0xf]
  %v179 = vld [vmem:[%s2 + $0x4] sm:$0xf]
  %v180 = vld [vmem:[%s2 + $0x8] sm:$0xf]
  %v181 = vld [vmem:[%s2 + $0xc] sm:$0xf]
  %v182 = vld [vmem:[%s2 + $0x10] sm:$0xf]
  %v183 = vld [vmem:[%s2 + $0x14] sm:$0xf]
  %v184 = vld [vmem:[%s2 + $0x18] sm:$0xf]
  %v185 = vld [vmem:[%s2 + $0x1c] sm:$0xf]
  %v186 = vld [vmem:[%s2 + $0x20] sm:$0xf]
  %v187 = vld [vmem:[%s2 + $0x24] sm:$0xf]
  %v188 = vld [vmem:[%s2 + $0x28] sm:$0xf]
  %v189 = vld [vmem:[%s2 + $0x2c] sm:$0xf]
  %v190 = vld [vmem:[%s2 + $0x30] sm:$0xf]
  %v191 = vld [vmem:[%s2 + $0x34] sm:$0xf]
  %v192 = vld [vmem:[%s2 + $0x38] sm:$0xf]
  %v193 = vld [vmem:[%s2 + $0x3c] sm:$0xf]
  %v258 = vunpack.c.l.b16 %v114
  %v259 = vunpack.c.l.b16 %v115
  %v260 = vunpack.c.l.b16 %v116
  %v261 = vunpack.c.l.b16 %v117
  %v262 = vunpack.c.l.b16 %v118
  %v263 = vunpack.c.l.b16 %v119
  %v264 = vunpack.c.l.b16 %v120
  %v265 = vunpack.c.l.b16 %v121
  %v266 = vunpack.c.l.b16 %v122
  %v267 = vunpack.c.l.b16 %v123
  %v268 = vunpack.c.l.b16 %v124
  %v269 = vunpack.c.l.b16 %v125
  %v270 = vunpack.c.l.b16 %v126
  %v271 = vunpack.c.l.b16 %v127
  %v272 = vunpack.c.l.b16 %v128
  %v273 = vunpack.c.l.b16 %v129
  %v274 = vunpack.c.l.b16 %v130
  %v275 = vunpack.c.l.b16 %v131
  %v276 = vunpack.c.l.b16 %v132
  %v277 = vunpack.c.l.b16 %v133
  %v278 = vunpack.c.l.b16 %v134
  %v279 = vunpack.c.l.b16 %v135
  %v280 = vunpack.c.l.b16 %v136
  %v281 = vunpack.c.l.b16 %v137
  %v282 = vunpack.c.l.b16 %v138
  %v283 = vunpack.c.l.b16 %v139
  %v284 = vunpack.c.l.b16 %v140
  %v285 = vunpack.c.l.b16 %v141
  %v286 = vunpack.c.l.b16 %v142
  %v287 = vunpack.c.l.b16 %v143
  %v288 = vunpack.c.l.b16 %v144
  %v289 = vunpack.c.l.b16 %v145
  %v290 = vunpack.c.l.b16 %v146
  %v291 = vunpack.c.l.b16 %v147
  %v292 = vunpack.c.l.b16 %v148
  %v293 = vunpack.c.l.b16 %v149
  %v294 = vunpack.c.l.b16 %v150
  %v295 = vunpack.c.l.b16 %v151
  %v296 = vunpack.c.l.b16 %v152
  %v297 = vunpack.c.l.b16 %v153
  %v298 = vunpack.c.l.b16 %v154
  %v299 = vunpack.c.l.b16 %v155
  %v300 = vunpack.c.l.b16 %v156
  %v301 = vunpack.c.l.b16 %v157
  %v302 = vunpack.c.l.b16 %v158
  %v303 = vunpack.c.l.b16 %v159
  %v304 = vunpack.c.l.b16 %v160
  %v305 = vunpack.c.l.b16 %v161
  %v306 = vunpack.c.l.b16 %v162
  %v307 = vunpack.c.l.b16 %v163
  %v308 = vunpack.c.l.b16 %v164
  %v309 = vunpack.c.l.b16 %v165
  %v310 = vunpack.c.l.b16 %v166
  %v311 = vunpack.c.l.b16 %v167
  %v312 = vunpack.c.l.b16 %v168
  %v313 = vunpack.c.l.b16 %v169
  %v314 = vunpack.c.l.b16 %v170
  %v315 = vunpack.c.l.b16 %v171
  %v316 = vunpack.c.l.b16 %v172
  %v317 = vunpack.c.l.b16 %v173
  %v318 = vunpack.c.l.b16 %v174
  %v319 = vunpack.c.l.b16 %v175
  %v320 = vunpack.c.l.b16 %v176
  %v321 = vunpack.c.l.b16 %v177
  %v322 = vpack.c.b16 %v259, %v258
  %v323 = vpack.c.b16 %v261, %v260
  %v324 = vpack.c.b16 %v263, %v262
  %v325 = vpack.c.b16 %v265, %v264
  %v326 = vpack.c.b16 %v267, %v266
  %v327 = vpack.c.b16 %v269, %v268
  %v328 = vpack.c.b16 %v271, %v270
  %v329 = vpack.c.b16 %v273, %v272
  %v330 = vpack.c.b16 %v275, %v274
  %v331 = vpack.c.b16 %v277, %v276
  %v332 = vpack.c.b16 %v279, %v278
  %v333 = vpack.c.b16 %v281, %v280
  %v334 = vpack.c.b16 %v283, %v282
  %v335 = vpack.c.b16 %v285, %v284
  %v336 = vpack.c.b16 %v287, %v286
  %v337 = vpack.c.b16 %v289, %v288
  %v338 = vpack.c.b16 %v291, %v290
  %v339 = vpack.c.b16 %v293, %v292
  %v340 = vpack.c.b16 %v295, %v294
  %v341 = vpack.c.b16 %v297, %v296
  %v342 = vpack.c.b16 %v299, %v298
  %v343 = vpack.c.b16 %v301, %v300
  %v344 = vpack.c.b16 %v303, %v302
  %v345 = vpack.c.b16 %v305, %v304
  %v346 = vpack.c.b16 %v307, %v306
  %v347 = vpack.c.b16 %v309, %v308
  %v348 = vpack.c.b16 %v311, %v310
  %v349 = vpack.c.b16 %v313, %v312
  %v350 = vpack.c.b16 %v315, %v314
  %v351 = vpack.c.b16 %v317, %v316
  %v352 = vpack.c.b16 %v319, %v318
  %v353 = vpack.c.b16 %v321, %v320
  %v402 = vunpack.c.l.b16 %v178
  %v403 = vunpack.c.l.b16 %v179
  %v404 = vunpack.c.l.b16 %v180
  %v405 = vunpack.c.l.b16 %v181
  %v406 = vunpack.c.l.b16 %v182
  %v407 = vunpack.c.l.b16 %v183
  %v408 = vunpack.c.l.b16 %v184
  %v409 = vunpack.c.l.b16 %v185
  %v410 = vunpack.c.l.b16 %v186
  %v411 = vunpack.c.l.b16 %v187
  %v412 = vunpack.c.l.b16 %v188
  %v413 = vunpack.c.l.b16 %v189
  %v414 = vunpack.c.l.b16 %v190
  %v415 = vunpack.c.l.b16 %v191
  %v416 = vunpack.c.l.b16 %v192
  %v417 = vunpack.c.l.b16 %v193
  %v418 = vpack.c.b16 %v403, %v402
  %v419 = vpack.c.b16 %v405, %v404
  %v420 = vpack.c.b16 %v407, %v406
  %v421 = vpack.c.b16 %v409, %v408
  %v422 = vpack.c.b16 %v411, %v410
  %v423 = vpack.c.b16 %v413, %v412
  %v424 = vpack.c.b16 %v415, %v414
  %v425 = vpack.c.b16 %v417, %v416
  %434 = vmatprep.subr.bf16.mxu0 0
  %435 = vmatpush1.bf16.msra.mxu0 %v425
  %436 = vmatprep.subr.bf16.mxu0 0
  %437 = vmatpush1.bf16.msra.mxu0 %v424
  %438 = vmatprep.subr.bf16.mxu0 0
  %439 = vmatpush1.bf16.msra.mxu0 %v423
  %440 = vmatprep.subr.bf16.mxu0 0
  %441 = vmatpush1.bf16.msra.mxu0 %v422
  %442 = vmatprep.subr.bf16.mxu0 0
  %443 = vmatpush1.bf16.msra.mxu0 %v421
  %444 = vmatprep.subr.bf16.mxu0 0
  %445 = vmatpush1.bf16.msra.mxu0 %v420
  %446 = vmatprep.subr.bf16.mxu0 0
  %447 = vmatpush1.bf16.msra.mxu0 %v419
  %448 = vmatprep.subr.bf16.mxu0 0
  %449 = vmatpush1.bf16.msra.mxu0 %v418
  %450 = vmatprep.subr.bf16.mxu0 0
  %451 = vmatpush2.bf16.msra.mxu0 0
  %452 = vmatprep.subr.bf16.mxu0 0
  %453 = vmatpush2.bf16.msra.mxu0 0
  %454 = vmatprep.subr.bf16.mxu0 0
  %455 = vmatpush2.bf16.msra.mxu0 0
  %456 = vmatprep.subr.bf16.mxu0 0
  %457 = vmatpush2.bf16.msra.mxu0 0
  %458 = vmatprep.subr.bf16.mxu0 0
  %459 = vmatpush2.bf16.msra.mxu0 0
  %460 = vmatprep.subr.bf16.mxu0 0
  %461 = vmatpush2.bf16.msra.mxu0 0
  %462 = vmatprep.subr.bf16.mxu0 0
  %463 = vmatpush2.bf16.msra.mxu0 0
  %464 = vmatprep.subr.bf16.mxu0 0
  %465 = vmatpush2.bf16.msra.mxu0 0
  %466 = vmatprep.mubr.bf16.mxu0 0
  %467 = vmatmul.mubr.bf16.gmra.mxu0 %v322
  %v468 = vpop.f32.mrf.mxu0
  %v469 = vadd.f32 0.0, %v468
  %v470 = vpop.f32.mrf.mxu0
  %v471 = vpop.f32.mrf.mxu0
  %v472 = vadd.f32 0.0, %v471
  %v473 = vpop.f32.mrf.mxu0
  %474 = vmatprep.mubr.bf16.mxu0 0
  %475 = vmatmul.mubr.bf16.gmra.mxu0 %v323
  %v476 = vpop.f32.mrf.mxu0
  %v477 = vadd.f32 0.0, %v476
  %v478 = vpop.f32.mrf.mxu0
  %v479 = vpop.f32.mrf.mxu0
  %v480 = vadd.f32 0.0, %v479
  %v481 = vpop.f32.mrf.mxu0
  %482 = vmatprep.mubr.bf16.mxu0 0
  %483 = vmatmul.mubr.bf16.gmra.mxu0 %v324
  %v484 = vpop.f32.mrf.mxu0
  %v485 = vadd.f32 0.0, %v484
  %v486 = vpop.f32.mrf.mxu0
  %v487 = vpop.f32.mrf.mxu0
  %v488 = vadd.f32 0.0, %v487
  %v489 = vpop.f32.mrf.mxu0
  %490 = vmatprep.mubr.bf16.mxu0 0
  %491 = vmatmul.mubr.bf16.gmra.mxu0 %v325
  %v492 = vpop.f32.mrf.mxu0
  %v493 = vadd.f32 0.0, %v492
  %v494 = vpop.f32.mrf.mxu0
  %v495 = vpop.f32.mrf.mxu0
  %v496 = vadd.f32 0.0, %v495
  %v497 = vpop.f32.mrf.mxu0
  %498 = vmatprep.mubr.bf16.mxu0 0
  %499 = vmatmul.mubr.bf16.gmra.mxu0 %v326
  %v500 = vpop.f32.mrf.mxu0
  %v501 = vadd.f32 0.0, %v500
  %v502 = vpop.f32.mrf.mxu0
  %v503 = vpop.f32.mrf.mxu0
  %v504 = vadd.f32 0.0, %v503
  %v505 = vpop.f32.mrf.mxu0
  %506 = vmatprep.mubr.bf16.mxu0 0
  %507 = vmatmul.mubr.bf16.gmra.mxu0 %v327
  %v508 = vpop.f32.mrf.mxu0
  %v509 = vadd.f32 0.0, %v508
  %v510 = vpop.f32.mrf.mxu0
  %v511 = vpop.f32.mrf.mxu0
  %v512 = vadd.f32 0.0, %v511
  %v513 = vpop.f32.mrf.mxu0
  %514 = vmatprep.mubr.bf16.mxu0 0
  %515 = vmatmul.mubr.bf16.gmra.mxu0 %v328
  %v516 = vpop.f32.mrf.mxu0
  %v517 = vadd.f32 0.0, %v516
  %v518 = vpop.f32.mrf.mxu0
  %v519 = vpop.f32.mrf.mxu0
  %v520 = vadd.f32 0.0, %v519
  %v521 = vpop.f32.mrf.mxu0
  %522 = vmatprep.mubr.bf16.mxu0 0
  %523 = vmatmul.mubr.bf16.gmra.mxu0 %v329
  %v524 = vpop.f32.mrf.mxu0
  %v525 = vadd.f32 0.0, %v524
  %v526 = vpop.f32.mrf.mxu0
  %v527 = vpop.f32.mrf.mxu0
  %v528 = vadd.f32 0.0, %v527
  %v529 = vpop.f32.mrf.mxu0
  %530 = vmatprep.mubr.bf16.mxu0 0
  %531 = vmatmul.mubr.bf16.gmra.mxu0 %v330
  %v532 = vpop.f32.mrf.mxu0
  %v533 = vadd.f32 0.0, %v532
  %v534 = vpop.f32.mrf.mxu0
  %v535 = vpop.f32.mrf.mxu0
  %v536 = vadd.f32 0.0, %v535
  %v537 = vpop.f32.mrf.mxu0
  %538 = vmatprep.mubr.bf16.mxu0 0
  %539 = vmatmul.mubr.bf16.gmra.mxu0 %v331
  %v540 = vpop.f32.mrf.mxu0
  %v541 = vadd.f32 0.0, %v540
  %v542 = vpop.f32.mrf.mxu0
  %v543 = vpop.f32.mrf.mxu0
  %v544 = vadd.f32 0.0, %v543
  %v545 = vpop.f32.mrf.mxu0
  %546 = vmatprep.mubr.bf16.mxu0 0
  %547 = vmatmul.mubr.bf16.gmra.mxu0 %v332
  %v548 = vpop.f32.mrf.mxu0
  %v549 = vadd.f32 0.0, %v548
  %v550 = vpop.f32.mrf.mxu0
  %v551 = vpop.f32.mrf.mxu0
  %v552 = vadd.f32 0.0, %v551
  %v553 = vpop.f32.mrf.mxu0
  %554 = vmatprep.mubr.bf16.mxu0 0
  %555 = vmatmul.mubr.bf16.gmra.mxu0 %v333
  %v556 = vpop.f32.mrf.mxu0
  %v557 = vadd.f32 0.0, %v556
  %v558 = vpop.f32.mrf.mxu0
  %v559 = vpop.f32.mrf.mxu0
  %v560 = vadd.f32 0.0, %v559
  %v561 = vpop.f32.mrf.mxu0
  %562 = vmatprep.mubr.bf16.mxu0 0
  %563 = vmatmul.mubr.bf16.gmra.mxu0 %v334
  %v564 = vpop.f32.mrf.mxu0
  %v565 = vadd.f32 0.0, %v564
  %v566 = vpop.f32.mrf.mxu0
  %v567 = vpop.f32.mrf.mxu0
  %v568 = vadd.f32 0.0, %v567
  %v569 = vpop.f32.mrf.mxu0
  %570 = vmatprep.mubr.bf16.mxu0 0
  %571 = vmatmul.mubr.bf16.gmra.mxu0 %v335
  %v572 = vpop.f32.mrf.mxu0
  %v573 = vadd.f32 0.0, %v572
  %v574 = vpop.f32.mrf.mxu0
  %v575 = vpop.f32.mrf.mxu0
  %v576 = vadd.f32 0.0, %v575
  %v577 = vpop.f32.mrf.mxu0
  %578 = vmatprep.mubr.bf16.mxu0 0
  %579 = vmatmul.mubr.bf16.gmra.mxu0 %v336
  %v580 = vpop.f32.mrf.mxu0
  %v581 = vadd.f32 0.0, %v580
  %v582 = vpop.f32.mrf.mxu0
  %v583 = vpop.f32.mrf.mxu0
  %v584 = vadd.f32 0.0, %v583
  %v585 = vpop.f32.mrf.mxu0
  %586 = vmatprep.mubr.bf16.mxu0 0
  %587 = vmatmul.mubr.bf16.gmra.mxu0 %v337
  %v588 = vpop.f32.mrf.mxu0
  %v589 = vadd.f32 0.0, %v588
  %v590 = vpop.f32.mrf.mxu0
  %v591 = vpop.f32.mrf.mxu0
  %v592 = vadd.f32 0.0, %v591
  %v593 = vpop.f32.mrf.mxu0
  %594 = vmatprep.mubr.bf16.mxu0 0
  %595 = vmatmul.mubr.bf16.gmra.mxu0 %v338
  %v596 = vpop.f32.mrf.mxu0
  %v597 = vadd.f32 0.0, %v596
  %v598 = vpop.f32.mrf.mxu0
  %v599 = vpop.f32.mrf.mxu0
  %v600 = vadd.f32 0.0, %v599
  %v601 = vpop.f32.mrf.mxu0
  %602 = vmatprep.mubr.bf16.mxu0 0
  %603 = vmatmul.mubr.bf16.gmra.mxu0 %v339
  %v604 = vpop.f32.mrf.mxu0
  %v605 = vadd.f32 0.0, %v604
  %v606 = vpop.f32.mrf.mxu0
  %v607 = vpop.f32.mrf.mxu0
  %v608 = vadd.f32 0.0, %v607
  %v609 = vpop.f32.mrf.mxu0
  %610 = vmatprep.mubr.bf16.mxu0 0
  %611 = vmatmul.mubr.bf16.gmra.mxu0 %v340
  %v612 = vpop.f32.mrf.mxu0
  %v613 = vadd.f32 0.0, %v612
  %v614 = vpop.f32.mrf.mxu0
  %v615 = vpop.f32.mrf.mxu0
  %v616 = vadd.f32 0.0, %v615
  %v617 = vpop.f32.mrf.mxu0
  %618 = vmatprep.mubr.bf16.mxu0 0
  %619 = vmatmul.mubr.bf16.gmra.mxu0 %v341
  %v620 = vpop.f32.mrf.mxu0
  %v621 = vadd.f32 0.0, %v620
  %v622 = vpop.f32.mrf.mxu0
  %v623 = vpop.f32.mrf.mxu0
  %v624 = vadd.f32 0.0, %v623
  %v625 = vpop.f32.mrf.mxu0
  %626 = vmatprep.mubr.bf16.mxu0 0
  %627 = vmatmul.mubr.bf16.gmra.mxu0 %v342
  %v628 = vpop.f32.mrf.mxu0
  %v629 = vadd.f32 0.0, %v628
  %v630 = vpop.f32.mrf.mxu0
  %v631 = vpop.f32.mrf.mxu0
  %v632 = vadd.f32 0.0, %v631
  %v633 = vpop.f32.mrf.mxu0
  %634 = vmatprep.mubr.bf16.mxu0 0
  %635 = vmatmul.mubr.bf16.gmra.mxu0 %v343
  %v636 = vpop.f32.mrf.mxu0
  %v637 = vadd.f32 0.0, %v636
  %v638 = vpop.f32.mrf.mxu0
  %v639 = vpop.f32.mrf.mxu0
  %v640 = vadd.f32 0.0, %v639
  %v641 = vpop.f32.mrf.mxu0
  %642 = vmatprep.mubr.bf16.mxu0 0
  %643 = vmatmul.mubr.bf16.gmra.mxu0 %v344
  %v644 = vpop.f32.mrf.mxu0
  %v645 = vadd.f32 0.0, %v644
  %v646 = vpop.f32.mrf.mxu0
  %v647 = vpop.f32.mrf.mxu0
  %v648 = vadd.f32 0.0, %v647
  %v649 = vpop.f32.mrf.mxu0
  %650 = vmatprep.mubr.bf16.mxu0 0
  %651 = vmatmul.mubr.bf16.gmra.mxu0 %v345
  %v652 = vpop.f32.mrf.mxu0
  %v653 = vadd.f32 0.0, %v652
  %v654 = vpop.f32.mrf.mxu0
  %v655 = vpop.f32.mrf.mxu0
  %v656 = vadd.f32 0.0, %v655
  %v657 = vpop.f32.mrf.mxu0
  %658 = vmatprep.mubr.bf16.mxu0 0
  %659 = vmatmul.mubr.bf16.gmra.mxu0 %v346
  %v660 = vpop.f32.mrf.mxu0
  %v661 = vadd.f32 0.0, %v660
  %v662 = vpop.f32.mrf.mxu0
  %v663 = vpop.f32.mrf.mxu0
  %v664 = vadd.f32 0.0, %v663
  %v665 = vpop.f32.mrf.mxu0
  %666 = vmatprep.mubr.bf16.mxu0 0
  %667 = vmatmul.mubr.bf16.gmra.mxu0 %v347
  %v668 = vpop.f32.mrf.mxu0
  %v669 = vadd.f32 0.0, %v668
  %v670 = vpop.f32.mrf.mxu0
  %v671 = vpop.f32.mrf.mxu0
  %v672 = vadd.f32 0.0, %v671
  %v673 = vpop.f32.mrf.mxu0
  %674 = vmatprep.mubr.bf16.mxu0 0
  %675 = vmatmul.mubr.bf16.gmra.mxu0 %v348
  %v676 = vpop.f32.mrf.mxu0
  %v677 = vadd.f32 0.0, %v676
  %v678 = vpop.f32.mrf.mxu0
  %v679 = vpop.f32.mrf.mxu0
  %v680 = vadd.f32 0.0, %v679
  %v681 = vpop.f32.mrf.mxu0
  %682 = vmatprep.mubr.bf16.mxu0 0
  %683 = vmatmul.mubr.bf16.gmra.mxu0 %v349
  %v684 = vpop.f32.mrf.mxu0
  %v685 = vadd.f32 0.0, %v684
  %v686 = vpop.f32.mrf.mxu0
  %v687 = vpop.f32.mrf.mxu0
  %v688 = vadd.f32 0.0, %v687
  %v689 = vpop.f32.mrf.mxu0
  %690 = vmatprep.mubr.bf16.mxu0 0
  %691 = vmatmul.mubr.bf16.gmra.mxu0 %v350
  %v692 = vpop.f32.mrf.mxu0
  %v693 = vadd.f32 0.0, %v692
  %v694 = vpop.f32.mrf.mxu0
  %v695 = vpop.f32.mrf.mxu0
  %v696 = vadd.f32 0.0, %v695
  %v697 = vpop.f32.mrf.mxu0
  %698 = vmatprep.mubr.bf16.mxu0 0
  %699 = vmatmul.mubr.bf16.gmra.mxu0 %v351
  %v700 = vpop.f32.mrf.mxu0
  %v701 = vadd.f32 0.0, %v700
  %v702 = vpop.f32.mrf.mxu0
  %v703 = vpop.f32.mrf.mxu0
  %v704 = vadd.f32 0.0, %v703
  %v705 = vpop.f32.mrf.mxu0
  %706 = vmatprep.mubr.bf16.mxu0 0
  %707 = vmatmul.mubr.bf16.gmra.mxu0 %v352
  %v708 = vpop.f32.mrf.mxu0
  %v709 = vadd.f32 0.0, %v708
  %v710 = vpop.f32.mrf.mxu0
  %v711 = vpop.f32.mrf.mxu0
  %v712 = vadd.f32 0.0, %v711
  %v713 = vpop.f32.mrf.mxu0
  %714 = vmatprep.mubr.bf16.mxu0 0
  %715 = vmatmul.mubr.bf16.gmra.mxu0 %v353
  %v716 = vpop.f32.mrf.mxu0
  %v717 = vadd.f32 0.0, %v716
  %v718 = vpop.f32.mrf.mxu0
  %v719 = vpop.f32.mrf.mxu0
  %v720 = vadd.f32 0.0, %v719
  %v721 = vpop.f32.mrf.mxu0
  %722 = vdwg.mxu0
  %724 = vset.pattern.permute.xlu0 0
  %725 = vperm.xlu0 %724, %v36
  %v726 = vpop.permute.xlu0 %725
  %729 = vset.pattern.permute.xlu0 0
  %730 = vperm.xlu0 %729, %v37
  %v731 = vpop.permute.xlu0 %730
  %734 = vset.pattern.permute.xlu0 0
  %735 = vperm.xlu0 %734, %v38
  %v736 = vpop.permute.xlu0 %735
  %739 = vset.pattern.permute.xlu0 0
  %740 = vperm.xlu0 %739, %v39
  %v741 = vpop.permute.xlu0 %740
  %744 = vset.pattern.permute.xlu0 0
  %745 = vperm.xlu0 %744, %v40
  %v746 = vpop.permute.xlu0 %745
  %749 = vset.pattern.permute.xlu0 0
  %750 = vperm.xlu0 %749, %v41
  %v751 = vpop.permute.xlu0 %750
  %754 = vset.pattern.permute.xlu0 0
  %755 = vperm.xlu0 %754, %v42
  %v756 = vpop.permute.xlu0 %755
  %759 = vset.pattern.permute.xlu0 0
  %760 = vperm.xlu0 %759, %v43
  %v761 = vpop.permute.xlu0 %760
  %764 = vset.pattern.permute.xlu0 0
  %765 = vperm.xlu0 %764, %v44
  %v766 = vpop.permute.xlu0 %765
  %769 = vset.pattern.permute.xlu0 0
  %770 = vperm.xlu0 %769, %v45
  %v771 = vpop.permute.xlu0 %770
  %774 = vset.pattern.permute.xlu0 0
  %775 = vperm.xlu0 %774, %v46
  %v776 = vpop.permute.xlu0 %775
  %779 = vset.pattern.permute.xlu0 0
  %780 = vperm.xlu0 %779, %v47
  %v781 = vpop.permute.xlu0 %780
  %784 = vset.pattern.permute.xlu0 0
  %785 = vperm.xlu0 %784, %v48
  %v786 = vpop.permute.xlu0 %785
  %789 = vset.pattern.permute.xlu0 0
  %790 = vperm.xlu0 %789, %v49
  %v791 = vpop.permute.xlu0 %790
  %794 = vset.pattern.permute.xlu0 0
  %795 = vperm.xlu0 %794, %v50
  %v796 = vpop.permute.xlu0 %795
  %799 = vset.pattern.permute.xlu0 0
  %800 = vperm.xlu0 %799, %v51
  %v801 = vpop.permute.xlu0 %800
  %804 = vset.pattern.permute.xlu0 0
  %805 = vperm.xlu0 %804, %v52
  %v806 = vpop.permute.xlu0 %805
  %809 = vset.pattern.permute.xlu0 0
  %810 = vperm.xlu0 %809, %v53
  %v811 = vpop.permute.xlu0 %810
  %814 = vset.pattern.permute.xlu0 0
  %815 = vperm.xlu0 %814, %v54
  %v816 = vpop.permute.xlu0 %815
  %819 = vset.pattern.permute.xlu0 0
  %820 = vperm.xlu0 %819, %v55
  %v821 = vpop.permute.xlu0 %820
  %824 = vset.pattern.permute.xlu0 0
  %825 = vperm.xlu0 %824, %v56
  %v826 = vpop.permute.xlu0 %825
  %829 = vset.pattern.permute.xlu0 0
  %830 = vperm.xlu0 %829, %v57
  %v831 = vpop.permute.xlu0 %830
  %834 = vset.pattern.permute.xlu0 0
  %835 = vperm.xlu0 %834, %v58
  %v836 = vpop.permute.xlu0 %835
  %839 = vset.pattern.permute.xlu0 0
  %840 = vperm.xlu0 %839, %v59
  %v841 = vpop.permute.xlu0 %840
  %844 = vset.pattern.permute.xlu0 0
  %845 = vperm.xlu0 %844, %v60
  %v846 = vpop.permute.xlu0 %845
  %849 = vset.pattern.permute.xlu0 0
  %850 = vperm.xlu0 %849, %v61
  %v851 = vpop.permute.xlu0 %850
  %854 = vset.pattern.permute.xlu0 0
  %855 = vperm.xlu0 %854, %v62
  %v856 = vpop.permute.xlu0 %855
  %859 = vset.pattern.permute.xlu0 0
  %860 = vperm.xlu0 %859, %v63
  %v861 = vpop.permute.xlu0 %860
  %864 = vset.pattern.permute.xlu0 0
  %865 = vperm.xlu0 %864, %v64
  %v866 = vpop.permute.xlu0 %865
  %869 = vset.pattern.permute.xlu0 0
  %870 = vperm.xlu0 %869, %v65
  %v871 = vpop.permute.xlu0 %870
  %874 = vset.pattern.permute.xlu0 0
  %875 = vperm.xlu0 %874, %v66
  %v876 = vpop.permute.xlu0 %875
  %879 = vset.pattern.permute.xlu0 0
  %880 = vperm.xlu0 %879, %v67
  %v881 = vpop.permute.xlu0 %880
  %884 = vset.pattern.permute.xlu0 0
  %885 = vperm.xlu0 %884, %v68
  %v886 = vpop.permute.xlu0 %885
  %889 = vset.pattern.permute.xlu0 0
  %890 = vperm.xlu0 %889, %v69
  %v891 = vpop.permute.xlu0 %890
  %894 = vset.pattern.permute.xlu0 0
  %895 = vperm.xlu0 %894, %v70
  %v896 = vpop.permute.xlu0 %895
  %899 = vset.pattern.permute.xlu0 0
  %900 = vperm.xlu0 %899, %v71
  %v901 = vpop.permute.xlu0 %900
  %904 = vset.pattern.permute.xlu0 0
  %905 = vperm.xlu0 %904, %v72
  %v906 = vpop.permute.xlu0 %905
  %909 = vset.pattern.permute.xlu0 0
  %910 = vperm.xlu0 %909, %v73
  %v911 = vpop.permute.xlu0 %910
  %914 = vset.pattern.permute.xlu0 0
  %915 = vperm.xlu0 %914, %v74
  %v916 = vpop.permute.xlu0 %915
  %919 = vset.pattern.permute.xlu0 0
  %920 = vperm.xlu0 %919, %v75
  %v921 = vpop.permute.xlu0 %920
  %924 = vset.pattern.permute.xlu0 0
  %925 = vperm.xlu0 %924, %v76
  %v926 = vpop.permute.xlu0 %925
  %929 = vset.pattern.permute.xlu0 0
  %930 = vperm.xlu0 %929, %v77
  %v931 = vpop.permute.xlu0 %930
  %934 = vset.pattern.permute.xlu0 0
  %935 = vperm.xlu0 %934, %v78
  %v936 = vpop.permute.xlu0 %935
  %939 = vset.pattern.permute.xlu0 0
  %940 = vperm.xlu0 %939, %v79
  %v941 = vpop.permute.xlu0 %940
  %944 = vset.pattern.permute.xlu0 0
  %945 = vperm.xlu0 %944, %v80
  %v946 = vpop.permute.xlu0 %945
  %949 = vset.pattern.permute.xlu0 0
  %950 = vperm.xlu0 %949, %v81
  %v951 = vpop.permute.xlu0 %950
  %954 = vset.pattern.permute.xlu0 0
  %955 = vperm.xlu0 %954, %v82
  %v956 = vpop.permute.xlu0 %955
  %959 = vset.pattern.permute.xlu0 0
  %960 = vperm.xlu0 %959, %v83
  %v961 = vpop.permute.xlu0 %960
  %964 = vset.pattern.permute.xlu0 0
  %965 = vperm.xlu0 %964, %v84
  %v966 = vpop.permute.xlu0 %965
  %969 = vset.pattern.permute.xlu0 0
  %970 = vperm.xlu0 %969, %v85
  %v971 = vpop.permute.xlu0 %970
  %974 = vset.pattern.permute.xlu0 0
  %975 = vperm.xlu0 %974, %v86
  %v976 = vpop.permute.xlu0 %975
  %979 = vset.pattern.permute.xlu0 0
  %980 = vperm.xlu0 %979, %v87
  %v981 = vpop.permute.xlu0 %980
  %984 = vset.pattern.permute.xlu0 0
  %985 = vperm.xlu0 %984, %v88
  %v986 = vpop.permute.xlu0 %985
  %989 = vset.pattern.permute.xlu0 0
  %990 = vperm.xlu0 %989, %v89
  %v991 = vpop.permute.xlu0 %990
  %994 = vset.pattern.permute.xlu0 0
  %995 = vperm.xlu0 %994, %v90
  %v996 = vpop.permute.xlu0 %995
  %999 = vset.pattern.permute.xlu0 0
  %1000 = vperm.xlu0 %999, %v91
  %v1001 = vpop.permute.xlu0 %1000
  %1004 = vset.pattern.permute.xlu0 0
  %1005 = vperm.xlu0 %1004, %v92
  %v1006 = vpop.permute.xlu0 %1005
  %1009 = vset.pattern.permute.xlu0 0
  %1010 = vperm.xlu0 %1009, %v93
  %v1011 = vpop.permute.xlu0 %1010
  %1014 = vset.pattern.permute.xlu0 0
  %1015 = vperm.xlu0 %1014, %v94
  %v1016 = vpop.permute.xlu0 %1015
  %1019 = vset.pattern.permute.xlu0 0
  %1020 = vperm.xlu0 %1019, %v95
  %v1021 = vpop.permute.xlu0 %1020
  %1024 = vset.pattern.permute.xlu0 0
  %1025 = vperm.xlu0 %1024, %v96
  %v1026 = vpop.permute.xlu0 %1025
  %1029 = vset.pattern.permute.xlu0 0
  %1030 = vperm.xlu0 %1029, %v97
  %v1031 = vpop.permute.xlu0 %1030
  %1034 = vset.pattern.permute.xlu0 0
  %1035 = vperm.xlu0 %1034, %v98
  %v1036 = vpop.permute.xlu0 %1035
  %1039 = vset.pattern.permute.xlu0 0
  %1040 = vperm.xlu0 %1039, %v99
  %v1041 = vpop.permute.xlu0 %1040
  %v1043 = vmul.f32 %v469, %v726
  %v1044 = vmul.f32 %v472, %v731
  %v1045 = vmul.f32 %v477, %v736
  %v1046 = vmul.f32 %v480, %v741
  %v1047 = vmul.f32 %v485, %v746
  %v1048 = vmul.f32 %v488, %v751
  %v1049 = vmul.f32 %v493, %v756
  %v1050 = vmul.f32 %v496, %v761
  %v1051 = vmul.f32 %v501, %v766
  %v1052 = vmul.f32 %v504, %v771
  %v1053 = vmul.f32 %v509, %v776
  %v1054 = vmul.f32 %v512, %v781
  %v1055 = vmul.f32 %v517, %v786
  %v1056 = vmul.f32 %v520, %v791
  %v1057 = vmul.f32 %v525, %v796
  %v1058 = vmul.f32 %v528, %v801
  %v1059 = vmul.f32 %v533, %v806
  %v1060 = vmul.f32 %v536, %v811
  %v1061 = vmul.f32 %v541, %v816
  %v1062 = vmul.f32 %v544, %v821
  %v1063 = vmul.f32 %v549, %v826
  %v1064 = vmul.f32 %v552, %v831
  %v1065 = vmul.f32 %v557, %v836
  %v1066 = vmul.f32 %v560, %v841
  %v1067 = vmul.f32 %v565, %v846
  %v1068 = vmul.f32 %v568, %v851
  %v1069 = vmul.f32 %v573, %v856
  %v1070 = vmul.f32 %v576, %v861
  %v1071 = vmul.f32 %v581, %v866
  %v1072 = vmul.f32 %v584, %v871
  %v1073 = vmul.f32 %v589, %v876
  %v1074 = vmul.f32 %v592, %v881
  %v1075 = vmul.f32 %v597, %v886
  %v1076 = vmul.f32 %v600, %v891
  %v1077 = vmul.f32 %v605, %v896
  %v1078 = vmul.f32 %v608, %v901
  %v1079 = vmul.f32 %v613, %v906
  %v1080 = vmul.f32 %v616, %v911
  %v1081 = vmul.f32 %v621, %v916
  %v1082 = vmul.f32 %v624, %v921
  %v1083 = vmul.f32 %v629, %v926
  %v1084 = vmul.f32 %v632, %v931
  %v1085 = vmul.f32 %v637, %v936
  %v1086 = vmul.f32 %v640, %v941
  %v1087 = vmul.f32 %v645, %v946
  %v1088 = vmul.f32 %v648, %v951
  %v1089 = vmul.f32 %v653, %v956
  %v1090 = vmul.f32 %v656, %v961
  %v1091 = vmul.f32 %v661, %v966
  %v1092 = vmul.f32 %v664, %v971
  %v1093 = vmul.f32 %v669, %v976
  %v1094 = vmul.f32 %v672, %v981
  %v1095 = vmul.f32 %v677, %v986
  %v1096 = vmul.f32 %v680, %v991
  %v1097 = vmul.f32 %v685, %v996
  %v1098 = vmul.f32 %v688, %v1001
  %v1099 = vmul.f32 %v693, %v1006
  %v1100 = vmul.f32 %v696, %v1011
  %v1101 = vmul.f32 %v701, %v1016
  %v1102 = vmul.f32 %v704, %v1021
  %v1103 = vmul.f32 %v709, %v1026
  %v1104 = vmul.f32 %v712, %v1031
  %v1105 = vmul.f32 %v717, %v1036
  %v1106 = vmul.f32 %v720, %v1041
  %v1107 = vadd.f32 %v1043, %v1044
  %v1108 = vadd.f32 %v1107, %v1045
  %v1109 = vadd.f32 %v1108, %v1046
  %v1110 = vadd.f32 %v1109, %v1047
  %v1111 = vadd.f32 %v1110, %v1048
  %v1112 = vadd.f32 %v1111, %v1049
  %v1113 = vadd.f32 %v1112, %v1050
  %v1114 = vadd.f32 %v1113, %v1051
  %v1115 = vadd.f32 %v1114, %v1052
  %v1116 = vadd.f32 %v1115, %v1053
  %v1117 = vadd.f32 %v1116, %v1054
  %v1118 = vadd.f32 %v1117, %v1055
  %v1119 = vadd.f32 %v1118, %v1056
  %v1120 = vadd.f32 %v1119, %v1057
  %v1121 = vadd.f32 %v1120, %v1058
  %v1122 = vadd.f32 %v1121, %v1059
  %v1123 = vadd.f32 %v1122, %v1060
  %v1124 = vadd.f32 %v1123, %v1061
  %v1125 = vadd.f32 %v1124, %v1062
  %v1126 = vadd.f32 %v1125, %v1063
  %v1127 = vadd.f32 %v1126, %v1064
  %v1128 = vadd.f32 %v1127, %v1065
  %v1129 = vadd.f32 %v1128, %v1066
  %v1130 = vadd.f32 %v1129, %v1067
  %v1131 = vadd.f32 %v1130, %v1068
  %v1132 = vadd.f32 %v1131, %v1069
  %v1133 = vadd.f32 %v1132, %v1070
  %v1134 = vadd.f32 %v1133, %v1071
  %v1135 = vadd.f32 %v1134, %v1072
  %v1136 = vadd.f32 %v1135, %v1073
  %v1137 = vadd.f32 %v1136, %v1074
  %v1138 = vadd.f32 %v1137, %v1075
  %v1139 = vadd.f32 %v1138, %v1076
  %v1140 = vadd.f32 %v1139, %v1077
  %v1141 = vadd.f32 %v1140, %v1078
  %v1142 = vadd.f32 %v1141, %v1079
  %v1143 = vadd.f32 %v1142, %v1080
  %v1144 = vadd.f32 %v1143, %v1081
  %v1145 = vadd.f32 %v1144, %v1082
  %v1146 = vadd.f32 %v1145, %v1083
  %v1147 = vadd.f32 %v1146, %v1084
  %v1148 = vadd.f32 %v1147, %v1085
  %v1149 = vadd.f32 %v1148, %v1086
  %v1150 = vadd.f32 %v1149, %v1087
  %v1151 = vadd.f32 %v1150, %v1088
  %v1152 = vadd.f32 %v1151, %v1089
  %v1153 = vadd.f32 %v1152, %v1090
  %v1154 = vadd.f32 %v1153, %v1091
  %v1155 = vadd.f32 %v1154, %v1092
  %v1156 = vadd.f32 %v1155, %v1093
  %v1157 = vadd.f32 %v1156, %v1094
  %v1158 = vadd.f32 %v1157, %v1095
  %v1159 = vadd.f32 %v1158, %v1096
  %v1160 = vadd.f32 %v1159, %v1097
  %v1161 = vadd.f32 %v1160, %v1098
  %v1162 = vadd.f32 %v1161, %v1099
  %v1163 = vadd.f32 %v1162, %v1100
  %v1164 = vadd.f32 %v1163, %v1101
  %v1165 = vadd.f32 %v1164, %v1102
  %v1166 = vadd.f32 %v1165, %v1103
  %v1167 = vadd.f32 %v1166, %v1104
  %v1168 = vadd.f32 %v1167, %v1105
  %v1169 = vadd.f32 %v1168, %v1106
  %v1170 = vrot.slane %v1169, 4
  %v1171 = vadd.f32 %v1169, %v1170
  %v1172 = vrot.slane %v1171, 2
  %v1173 = vadd.f32 %v1171, %v1172
  %v1174 = vrot.slane %v1173, 1
  %v1175 = vadd.f32 %v1173, %v1174
  %v1176 = vrcp.pop 392.0
  %v1177 = vmul.f32 %v1175, %v1176
  %v1178 = vsub.f32 %v469, %v1177
  %v1179 = vsub.f32 %v472, %v1177
  %v1180 = vsub.f32 %v477, %v1177
  %v1181 = vsub.f32 %v480, %v1177
  %v1182 = vsub.f32 %v485, %v1177
  %v1183 = vsub.f32 %v488, %v1177
  %v1184 = vsub.f32 %v493, %v1177
  %v1185 = vsub.f32 %v496, %v1177
  %v1186 = vsub.f32 %v501, %v1177
  %v1187 = vsub.f32 %v504, %v1177
  %v1188 = vsub.f32 %v509, %v1177
  %v1189 = vsub.f32 %v512, %v1177
  %v1190 = vsub.f32 %v517, %v1177
  %v1191 = vsub.f32 %v520, %v1177
  %v1192 = vsub.f32 %v525, %v1177
  %v1193 = vsub.f32 %v528, %v1177
  %v1194 = vsub.f32 %v533, %v1177
  %v1195 = vsub.f32 %v536, %v1177
  %v1196 = vsub.f32 %v541, %v1177
  %v1197 = vsub.f32 %v544, %v1177
  %v1198 = vsub.f32 %v549, %v1177
  %v1199 = vsub.f32 %v552, %v1177
  %v1200 = vsub.f32 %v557, %v1177
  %v1201 = vsub.f32 %v560, %v1177
  %v1202 = vsub.f32 %v565, %v1177
  %v1203 = vsub.f32 %v568, %v1177
  %v1204 = vsub.f32 %v573, %v1177
  %v1205 = vsub.f32 %v576, %v1177
  %v1206 = vsub.f32 %v581, %v1177
  %v1207 = vsub.f32 %v584, %v1177
  %v1208 = vsub.f32 %v589, %v1177
  %v1209 = vsub.f32 %v592, %v1177
  %v1210 = vsub.f32 %v597, %v1177
  %v1211 = vsub.f32 %v600, %v1177
  %v1212 = vsub.f32 %v605, %v1177
  %v1213 = vsub.f32 %v608, %v1177
  %v1214 = vsub.f32 %v613, %v1177
  %v1215 = vsub.f32 %v616, %v1177
  %v1216 = vsub.f32 %v621, %v1177
  %v1217 = vsub.f32 %v624, %v1177
  %v1218 = vsub.f32 %v629, %v1177
  %v1219 = vsub.f32 %v632, %v1177
  %v1220 = vsub.f32 %v637, %v1177
  %v1221 = vsub.f32 %v640, %v1177
  %v1222 = vsub.f32 %v645, %v1177
  %v1223 = vsub.f32 %v648, %v1177
  %v1224 = vsub.f32 %v653, %v1177
  %v1225 = vsub.f32 %v656, %v1177
  %v1226 = vsub.f32 %v661, %v1177
  %v1227 = vsub.f32 %v664, %v1177
  %v1228 = vsub.f32 %v669, %v1177
  %v1229 = vsub.f32 %v672, %v1177
  %v1230 = vsub.f32 %v677, %v1177
  %v1231 = vsub.f32 %v680, %v1177
  %v1232 = vsub.f32 %v685, %v1177
  %v1233 = vsub.f32 %v688, %v1177
  %v1234 = vsub.f32 %v693, %v1177
  %v1235 = vsub.f32 %v696, %v1177
  %v1236 = vsub.f32 %v701, %v1177
  %v1237 = vsub.f32 %v704, %v1177
  %v1238 = vsub.f32 %v709, %v1177
  %v1239 = vsub.f32 %v712, %v1177
  %v1240 = vsub.f32 %v717, %v1177
  %v1241 = vsub.f32 %v720, %v1177
  %v1242 = vmul.f32 %v1178, %v726
  %v1243 = vmul.f32 %v1179, %v731
  %v1244 = vmul.f32 %v1180, %v736
  %v1245 = vmul.f32 %v1181, %v741
  %v1246 = vmul.f32 %v1182, %v746
  %v1247 = vmul.f32 %v1183, %v751
  %v1248 = vmul.f32 %v1184, %v756
  %v1249 = vmul.f32 %v1185, %v761
  %v1250 = vmul.f32 %v1186, %v766
  %v1251 = vmul.f32 %v1187, %v771
  %v1252 = vmul.f32 %v1188, %v776
  %v1253 = vmul.f32 %v1189, %v781
  %v1254 = vmul.f32 %v1190, %v786
  %v1255 = vmul.f32 %v1191, %v791
  %v1256 = vmul.f32 %v1192, %v796
  %v1257 = vmul.f32 %v1193, %v801
  %v1258 = vmul.f32 %v1194, %v806
  %v1259 = vmul.f32 %v1195, %v811
  %v1260 = vmul.f32 %v1196, %v816
  %v1261 = vmul.f32 %v1197, %v821
  %v1262 = vmul.f32 %v1198, %v826
  %v1263 = vmul.f32 %v1199, %v831
  %v1264 = vmul.f32 %v1200, %v836
  %v1265 = vmul.f32 %v1201, %v841
  %v1266 = vmul.f32 %v1202, %v846
  %v1267 = vmul.f32 %v1203, %v851
  %v1268 = vmul.f32 %v1204, %v856
  %v1269 = vmul.f32 %v1205, %v861
  %v1270 = vmul.f32 %v1206, %v866
  %v1271 = vmul.f32 %v1207, %v871
  %v1272 = vmul.f32 %v1208, %v876
  %v1273 = vmul.f32 %v1209, %v881
  %v1274 = vmul.f32 %v1210, %v886
  %v1275 = vmul.f32 %v1211, %v891
  %v1276 = vmul.f32 %v1212, %v896
  %v1277 = vmul.f32 %v1213, %v901
  %v1278 = vmul.f32 %v1214, %v906
  %v1279 = vmul.f32 %v1215, %v911
  %v1280 = vmul.f32 %v1216, %v916
  %v1281 = vmul.f32 %v1217, %v921
  %v1282 = vmul.f32 %v1218, %v926
  %v1283 = vmul.f32 %v1219, %v931
  %v1284 = vmul.f32 %v1220, %v936
  %v1285 = vmul.f32 %v1221, %v941
  %v1286 = vmul.f32 %v1222, %v946
  %v1287 = vmul.f32 %v1223, %v951
  %v1288 = vmul.f32 %v1224, %v956
  %v1289 = vmul.f32 %v1225, %v961
  %v1290 = vmul.f32 %v1226, %v966
  %v1291 = vmul.f32 %v1227, %v971
  %v1292 = vmul.f32 %v1228, %v976
  %v1293 = vmul.f32 %v1229, %v981
  %v1294 = vmul.f32 %v1230, %v986
  %v1295 = vmul.f32 %v1231, %v991
  %v1296 = vmul.f32 %v1232, %v996
  %v1297 = vmul.f32 %v1233, %v1001
  %v1298 = vmul.f32 %v1234, %v1006
  %v1299 = vmul.f32 %v1235, %v1011
  %v1300 = vmul.f32 %v1236, %v1016
  %v1301 = vmul.f32 %v1237, %v1021
  %v1302 = vmul.f32 %v1238, %v1026
  %v1303 = vmul.f32 %v1239, %v1031
  %v1304 = vmul.f32 %v1240, %v1036
  %v1305 = vmul.f32 %v1241, %v1041
  %v1306 = vmul.f32 %v1242, %v1242
  %v1307 = vmul.f32 %v1243, %v1243
  %v1308 = vmul.f32 %v1244, %v1244
  %v1309 = vmul.f32 %v1245, %v1245
  %v1310 = vmul.f32 %v1246, %v1246
  %v1311 = vmul.f32 %v1247, %v1247
  %v1312 = vmul.f32 %v1248, %v1248
  %v1313 = vmul.f32 %v1249, %v1249
  %v1314 = vmul.f32 %v1250, %v1250
  %v1315 = vmul.f32 %v1251, %v1251
  %v1316 = vmul.f32 %v1252, %v1252
  %v1317 = vmul.f32 %v1253, %v1253
  %v1318 = vmul.f32 %v1254, %v1254
  %v1319 = vmul.f32 %v1255, %v1255
  %v1320 = vmul.f32 %v1256, %v1256
  %v1321 = vmul.f32 %v1257, %v1257
  %v1322 = vmul.f32 %v1258, %v1258
  %v1323 = vmul.f32 %v1259, %v1259
  %v1324 = vmul.f32 %v1260, %v1260
  %v1325 = vmul.f32 %v1261, %v1261
  %v1326 = vmul.f32 %v1262, %v1262
  %v1327 = vmul.f32 %v1263, %v1263
  %v1328 = vmul.f32 %v1264, %v1264
  %v1329 = vmul.f32 %v1265, %v1265
  %v1330 = vmul.f32 %v1266, %v1266
  %v1331 = vmul.f32 %v1267, %v1267
  %v1332 = vmul.f32 %v1268, %v1268
  %v1333 = vmul.f32 %v1269, %v1269
  %v1334 = vmul.f32 %v1270, %v1270
  %v1335 = vmul.f32 %v1271, %v1271
  %v1336 = vmul.f32 %v1272, %v1272
  %v1337 = vmul.f32 %v1273, %v1273
  %v1338 = vmul.f32 %v1274, %v1274
  %v1339 = vmul.f32 %v1275, %v1275
  %v1340 = vmul.f32 %v1276, %v1276
  %v1341 = vmul.f32 %v1277, %v1277
  %v1342 = vmul.f32 %v1278, %v1278
  %v1343 = vmul.f32 %v1279, %v1279
  %v1344 = vmul.f32 %v1280, %v1280
  %v1345 = vmul.f32 %v1281, %v1281
  %v1346 = vmul.f32 %v1282, %v1282
  %v1347 = vmul.f32 %v1283, %v1283
  %v1348 = vmul.f32 %v1284, %v1284
  %v1349 = vmul.f32 %v1285, %v1285
  %v1350 = vmul.f32 %v1286, %v1286
  %v1351 = vmul.f32 %v1287, %v1287
  %v1352 = vmul.f32 %v1288, %v1288
  %v1353 = vmul.f32 %v1289, %v1289
  %v1354 = vmul.f32 %v1290, %v1290
  %v1355 = vmul.f32 %v1291, %v1291
  %v1356 = vmul.f32 %v1292, %v1292
  %v1357 = vmul.f32 %v1293, %v1293
  %v1358 = vmul.f32 %v1294, %v1294
  %v1359 = vmul.f32 %v1295, %v1295
  %v1360 = vmul.f32 %v1296, %v1296
  %v1361 = vmul.f32 %v1297, %v1297
  %v1362 = vmul.f32 %v1298, %v1298
  %v1363 = vmul.f32 %v1299, %v1299
  %v1364 = vmul.f32 %v1300, %v1300
  %v1365 = vmul.f32 %v1301, %v1301
  %v1366 = vmul.f32 %v1302, %v1302
  %v1367 = vmul.f32 %v1303, %v1303
  %v1368 = vmul.f32 %v1304, %v1304
  %v1369 = vmul.f32 %v1305, %v1305
  %v1370 = vadd.f32 %v1306, %v1307
  %v1371 = vadd.f32 %v1370, %v1308
  %v1372 = vadd.f32 %v1371, %v1309
  %v1373 = vadd.f32 %v1372, %v1310
  %v1374 = vadd.f32 %v1373, %v1311
  %v1375 = vadd.f32 %v1374, %v1312
  %v1376 = vadd.f32 %v1375, %v1313
  %v1377 = vadd.f32 %v1376, %v1314
  %v1378 = vadd.f32 %v1377, %v1315
  %v1379 = vadd.f32 %v1378, %v1316
  %v1380 = vadd.f32 %v1379, %v1317
  %v1381 = vadd.f32 %v1380, %v1318
  %v1382 = vadd.f32 %v1381, %v1319
  %v1383 = vadd.f32 %v1382, %v1320
  %v1384 = vadd.f32 %v1383, %v1321
  %v1385 = vadd.f32 %v1384, %v1322
  %v1386 = vadd.f32 %v1385, %v1323
  %v1387 = vadd.f32 %v1386, %v1324
  %v1388 = vadd.f32 %v1387, %v1325
  %v1389 = vadd.f32 %v1388, %v1326
  %v1390 = vadd.f32 %v1389, %v1327
  %v1391 = vadd.f32 %v1390, %v1328
  %v1392 = vadd.f32 %v1391, %v1329
  %v1393 = vadd.f32 %v1392, %v1330
  %v1394 = vadd.f32 %v1393, %v1331
  %v1395 = vadd.f32 %v1394, %v1332
  %v1396 = vadd.f32 %v1395, %v1333
  %v1397 = vadd.f32 %v1396, %v1334
  %v1398 = vadd.f32 %v1397, %v1335
  %v1399 = vadd.f32 %v1398, %v1336
  %v1400 = vadd.f32 %v1399, %v1337
  %v1401 = vadd.f32 %v1400, %v1338
  %v1402 = vadd.f32 %v1401, %v1339
  %v1403 = vadd.f32 %v1402, %v1340
  %v1404 = vadd.f32 %v1403, %v1341
  %v1405 = vadd.f32 %v1404, %v1342
  %v1406 = vadd.f32 %v1405, %v1343
  %v1407 = vadd.f32 %v1406, %v1344
  %v1408 = vadd.f32 %v1407, %v1345
  %v1409 = vadd.f32 %v1408, %v1346
  %v1410 = vadd.f32 %v1409, %v1347
  %v1411 = vadd.f32 %v1410, %v1348
  %v1412 = vadd.f32 %v1411, %v1349
  %v1413 = vadd.f32 %v1412, %v1350
  %v1414 = vadd.f32 %v1413, %v1351
  %v1415 = vadd.f32 %v1414, %v1352
  %v1416 = vadd.f32 %v1415, %v1353
  %v1417 = vadd.f32 %v1416, %v1354
  %v1418 = vadd.f32 %v1417, %v1355
  %v1419 = vadd.f32 %v1418, %v1356
  %v1420 = vadd.f32 %v1419, %v1357
  %v1421 = vadd.f32 %v1420, %v1358
  %v1422 = vadd.f32 %v1421, %v1359
  %v1423 = vadd.f32 %v1422, %v1360
  %v1424 = vadd.f32 %v1423, %v1361
  %v1425 = vadd.f32 %v1424, %v1362
  %v1426 = vadd.f32 %v1425, %v1363
  %v1427 = vadd.f32 %v1426, %v1364
  %v1428 = vadd.f32 %v1427, %v1365
  %v1429 = vadd.f32 %v1428, %v1366
  %v1430 = vadd.f32 %v1429, %v1367
  %v1431 = vadd.f32 %v1430, %v1368
  %v1432 = vadd.f32 %v1431, %v1369
  %v1433 = vrot.slane %v1432, 4
  %v1434 = vadd.f32 %v1432, %v1433
  %v1435 = vrot.slane %v1434, 2
  %v1436 = vadd.f32 %v1434, %v1435
  %v1437 = vrot.slane %v1436, 1
  %v1438 = vadd.f32 %v1436, %v1437
  %v1439 = vmul.f32 %v1438, %v1176
  %v1440 = vmax.f32 %v1439, 0.0
  %v1441 = vld [vmem:[%s3] sm:$0x1]
  %v1442 = vld [vmem:[%s4] sm:$0x1]
  %v1443 = vadd.f32 %v1440, 1e-05
  %v1444 = vrsqrt.pop %v1443
  %v1445 = vmul.f32 %v1242, %v1444
  %v1446 = vmul.f32 %v1243, %v1444
  %v1447 = vmul.f32 %v1244, %v1444
  %v1448 = vmul.f32 %v1245, %v1444
  %v1449 = vmul.f32 %v1246, %v1444
  %v1450 = vmul.f32 %v1247, %v1444
  %v1451 = vmul.f32 %v1248, %v1444
  %v1452 = vmul.f32 %v1249, %v1444
  %v1453 = vmul.f32 %v1250, %v1444
  %v1454 = vmul.f32 %v1251, %v1444
  %v1455 = vmul.f32 %v1252, %v1444
  %v1456 = vmul.f32 %v1253, %v1444
  %v1457 = vmul.f32 %v1254, %v1444
  %v1458 = vmul.f32 %v1255, %v1444
  %v1459 = vmul.f32 %v1256, %v1444
  %v1460 = vmul.f32 %v1257, %v1444
  %v1461 = vmul.f32 %v1258, %v1444
  %v1462 = vmul.f32 %v1259, %v1444
  %v1463 = vmul.f32 %v1260, %v1444
  %v1464 = vmul.f32 %v1261, %v1444
  %v1465 = vmul.f32 %v1262, %v1444
  %v1466 = vmul.f32 %v1263, %v1444
  %v1467 = vmul.f32 %v1264, %v1444
  %v1468 = vmul.f32 %v1265, %v1444
  %v1469 = vmul.f32 %v1266, %v1444
  %v1470 = vmul.f32 %v1267, %v1444
  %v1471 = vmul.f32 %v1268, %v1444
  %v1472 = vmul.f32 %v1269, %v1444
  %v1473 = vmul.f32 %v1270, %v1444
  %v1474 = vmul.f32 %v1271, %v1444
  %v1475 = vmul.f32 %v1272, %v1444
  %v1476 = vmul.f32 %v1273, %v1444
  %v1477 = vmul.f32 %v1274, %v1444
  %v1478 = vmul.f32 %v1275, %v1444
  %v1479 = vmul.f32 %v1276, %v1444
  %v1480 = vmul.f32 %v1277, %v1444
  %v1481 = vmul.f32 %v1278, %v1444
  %v1482 = vmul.f32 %v1279, %v1444
  %v1483 = vmul.f32 %v1280, %v1444
  %v1484 = vmul.f32 %v1281, %v1444
  %v1485 = vmul.f32 %v1282, %v1444
  %v1486 = vmul.f32 %v1283, %v1444
  %v1487 = vmul.f32 %v1284, %v1444
  %v1488 = vmul.f32 %v1285, %v1444
  %v1489 = vmul.f32 %v1286, %v1444
  %v1490 = vmul.f32 %v1287, %v1444
  %v1491 = vmul.f32 %v1288, %v1444
  %v1492 = vmul.f32 %v1289, %v1444
  %v1493 = vmul.f32 %v1290, %v1444
  %v1494 = vmul.f32 %v1291, %v1444
  %v1495 = vmul.f32 %v1292, %v1444
  %v1496 = vmul.f32 %v1293, %v1444
  %v1497 = vmul.f32 %v1294, %v1444
  %v1498 = vmul.f32 %v1295, %v1444
  %v1499 = vmul.f32 %v1296, %v1444
  %v1500 = vmul.f32 %v1297, %v1444
  %v1501 = vmul.f32 %v1298, %v1444
  %v1502 = vmul.f32 %v1299, %v1444
  %v1503 = vmul.f32 %v1300, %v1444
  %v1504 = vmul.f32 %v1301, %v1444
  %v1505 = vmul.f32 %v1302, %v1444
  %v1506 = vmul.f32 %v1303, %v1444
  %v1507 = vmul.f32 %v1304, %v1444
  %v1508 = vmul.f32 %v1305, %v1444
  %v1510 = vlaneseq
  %v1511 = vshrl.u32 %v1510, 7
  %v1512 = vsub.s32 0, %v1511
  %v1513 = vrot.slane %v1441, %v1512
  %v1515 = vmul.f32 %v1445, %v1513
  %v1516 = vmul.f32 %v1446, %v1513
  %v1517 = vmul.f32 %v1447, %v1513
  %v1518 = vmul.f32 %v1448, %v1513
  %v1519 = vmul.f32 %v1449, %v1513
  %v1520 = vmul.f32 %v1450, %v1513
  %v1521 = vmul.f32 %v1451, %v1513
  %v1522 = vmul.f32 %v1452, %v1513
  %v1523 = vmul.f32 %v1453, %v1513
  %v1524 = vmul.f32 %v1454, %v1513
  %v1525 = vmul.f32 %v1455, %v1513
  %v1526 = vmul.f32 %v1456, %v1513
  %v1527 = vmul.f32 %v1457, %v1513
  %v1528 = vmul.f32 %v1458, %v1513
  %v1529 = vmul.f32 %v1459, %v1513
  %v1530 = vmul.f32 %v1460, %v1513
  %v1531 = vmul.f32 %v1461, %v1513
  %v1532 = vmul.f32 %v1462, %v1513
  %v1533 = vmul.f32 %v1463, %v1513
  %v1534 = vmul.f32 %v1464, %v1513
  %v1535 = vmul.f32 %v1465, %v1513
  %v1536 = vmul.f32 %v1466, %v1513
  %v1537 = vmul.f32 %v1467, %v1513
  %v1538 = vmul.f32 %v1468, %v1513
  %v1539 = vmul.f32 %v1469, %v1513
  %v1540 = vmul.f32 %v1470, %v1513
  %v1541 = vmul.f32 %v1471, %v1513
  %v1542 = vmul.f32 %v1472, %v1513
  %v1543 = vmul.f32 %v1473, %v1513
  %v1544 = vmul.f32 %v1474, %v1513
  %v1545 = vmul.f32 %v1475, %v1513
  %v1546 = vmul.f32 %v1476, %v1513
  %v1547 = vmul.f32 %v1477, %v1513
  %v1548 = vmul.f32 %v1478, %v1513
  %v1549 = vmul.f32 %v1479, %v1513
  %v1550 = vmul.f32 %v1480, %v1513
  %v1551 = vmul.f32 %v1481, %v1513
  %v1552 = vmul.f32 %v1482, %v1513
  %v1553 = vmul.f32 %v1483, %v1513
  %v1554 = vmul.f32 %v1484, %v1513
  %v1555 = vmul.f32 %v1485, %v1513
  %v1556 = vmul.f32 %v1486, %v1513
  %v1557 = vmul.f32 %v1487, %v1513
  %v1558 = vmul.f32 %v1488, %v1513
  %v1559 = vmul.f32 %v1489, %v1513
  %v1560 = vmul.f32 %v1490, %v1513
  %v1561 = vmul.f32 %v1491, %v1513
  %v1562 = vmul.f32 %v1492, %v1513
  %v1563 = vmul.f32 %v1493, %v1513
  %v1564 = vmul.f32 %v1494, %v1513
  %v1565 = vmul.f32 %v1495, %v1513
  %v1566 = vmul.f32 %v1496, %v1513
  %v1567 = vmul.f32 %v1497, %v1513
  %v1568 = vmul.f32 %v1498, %v1513
  %v1569 = vmul.f32 %v1499, %v1513
  %v1570 = vmul.f32 %v1500, %v1513
  %v1571 = vmul.f32 %v1501, %v1513
  %v1572 = vmul.f32 %v1502, %v1513
  %v1573 = vmul.f32 %v1503, %v1513
  %v1574 = vmul.f32 %v1504, %v1513
  %v1575 = vmul.f32 %v1505, %v1513
  %v1576 = vmul.f32 %v1506, %v1513
  %v1577 = vmul.f32 %v1507, %v1513
  %v1578 = vmul.f32 %v1508, %v1513
  %v1580 = vlaneseq
  %v1581 = vshrl.u32 %v1580, 7
  %v1582 = vsub.s32 0, %v1581
  %v1583 = vrot.slane %v1442, %v1582
  %v1585 = vadd.f32 %v1515, %v1583
  %v1586 = vadd.f32 %v1516, %v1583
  %v1587 = vadd.f32 %v1517, %v1583
  %v1588 = vadd.f32 %v1518, %v1583
  %v1589 = vadd.f32 %v1519, %v1583
  %v1590 = vadd.f32 %v1520, %v1583
  %v1591 = vadd.f32 %v1521, %v1583
  %v1592 = vadd.f32 %v1522, %v1583
  %v1593 = vadd.f32 %v1523, %v1583
  %v1594 = vadd.f32 %v1524, %v1583
  %v1595 = vadd.f32 %v1525, %v1583
  %v1596 = vadd.f32 %v1526, %v1583
  %v1597 = vadd.f32 %v1527, %v1583
  %v1598 = vadd.f32 %v1528, %v1583
  %v1599 = vadd.f32 %v1529, %v1583
  %v1600 = vadd.f32 %v1530, %v1583
  %v1601 = vadd.f32 %v1531, %v1583
  %v1602 = vadd.f32 %v1532, %v1583
  %v1603 = vadd.f32 %v1533, %v1583
  %v1604 = vadd.f32 %v1534, %v1583
  %v1605 = vadd.f32 %v1535, %v1583
  %v1606 = vadd.f32 %v1536, %v1583
  %v1607 = vadd.f32 %v1537, %v1583
  %v1608 = vadd.f32 %v1538, %v1583
  %v1609 = vadd.f32 %v1539, %v1583
  %v1610 = vadd.f32 %v1540, %v1583
  %v1611 = vadd.f32 %v1541, %v1583
  %v1612 = vadd.f32 %v1542, %v1583
  %v1613 = vadd.f32 %v1543, %v1583
  %v1614 = vadd.f32 %v1544, %v1583
  %v1615 = vadd.f32 %v1545, %v1583
  %v1616 = vadd.f32 %v1546, %v1583
  %v1617 = vadd.f32 %v1547, %v1583
  %v1618 = vadd.f32 %v1548, %v1583
  %v1619 = vadd.f32 %v1549, %v1583
  %v1620 = vadd.f32 %v1550, %v1583
  %v1621 = vadd.f32 %v1551, %v1583
  %v1622 = vadd.f32 %v1552, %v1583
  %v1623 = vadd.f32 %v1553, %v1583
  %v1624 = vadd.f32 %v1554, %v1583
  %v1625 = vadd.f32 %v1555, %v1583
  %v1626 = vadd.f32 %v1556, %v1583
  %v1627 = vadd.f32 %v1557, %v1583
  %v1628 = vadd.f32 %v1558, %v1583
  %v1629 = vadd.f32 %v1559, %v1583
  %v1630 = vadd.f32 %v1560, %v1583
  %v1631 = vadd.f32 %v1561, %v1583
  %v1632 = vadd.f32 %v1562, %v1583
  %v1633 = vadd.f32 %v1563, %v1583
  %v1634 = vadd.f32 %v1564, %v1583
  %v1635 = vadd.f32 %v1565, %v1583
  %v1636 = vadd.f32 %v1566, %v1583
  %v1637 = vadd.f32 %v1567, %v1583
  %v1638 = vadd.f32 %v1568, %v1583
  %v1639 = vadd.f32 %v1569, %v1583
  %v1640 = vadd.f32 %v1570, %v1583
  %v1641 = vadd.f32 %v1571, %v1583
  %v1642 = vadd.f32 %v1572, %v1583
  %v1643 = vadd.f32 %v1573, %v1583
  %v1644 = vadd.f32 %v1574, %v1583
  %v1645 = vadd.f32 %v1575, %v1583
  %v1646 = vadd.f32 %v1576, %v1583
  %v1647 = vadd.f32 %v1577, %v1583
  %v1648 = vadd.f32 %v1578, %v1583
  %vm1649 = vcmp.gt.f32.partialorder %v1585, 0.0
  %vm1650 = vcmp.gt.f32.partialorder %v1586, 0.0
  %vm1651 = vcmp.gt.f32.partialorder %v1587, 0.0
  %vm1652 = vcmp.gt.f32.partialorder %v1588, 0.0
  %vm1653 = vcmp.gt.f32.partialorder %v1589, 0.0
  %vm1654 = vcmp.gt.f32.partialorder %v1590, 0.0
  %vm1655 = vcmp.gt.f32.partialorder %v1591, 0.0
  %vm1656 = vcmp.gt.f32.partialorder %v1592, 0.0
  %vm1657 = vcmp.gt.f32.partialorder %v1593, 0.0
  %vm1658 = vcmp.gt.f32.partialorder %v1594, 0.0
  %vm1659 = vcmp.gt.f32.partialorder %v1595, 0.0
  %vm1660 = vcmp.gt.f32.partialorder %v1596, 0.0
  %vm1661 = vcmp.gt.f32.partialorder %v1597, 0.0
  %vm1662 = vcmp.gt.f32.partialorder %v1598, 0.0
  %vm1663 = vcmp.gt.f32.partialorder %v1599, 0.0
  %vm1664 = vcmp.gt.f32.partialorder %v1600, 0.0
  %vm1665 = vcmp.gt.f32.partialorder %v1601, 0.0
  %vm1666 = vcmp.gt.f32.partialorder %v1602, 0.0
  %vm1667 = vcmp.gt.f32.partialorder %v1603, 0.0
  %vm1668 = vcmp.gt.f32.partialorder %v1604, 0.0
  %vm1669 = vcmp.gt.f32.partialorder %v1605, 0.0
  %vm1670 = vcmp.gt.f32.partialorder %v1606, 0.0
  %vm1671 = vcmp.gt.f32.partialorder %v1607, 0.0
  %vm1672 = vcmp.gt.f32.partialorder %v1608, 0.0
  %vm1673 = vcmp.gt.f32.partialorder %v1609, 0.0
  %vm1674 = vcmp.gt.f32.partialorder %v1610, 0.0
  %vm1675 = vcmp.gt.f32.partialorder %v1611, 0.0
  %vm1676 = vcmp.gt.f32.partialorder %v1612, 0.0
  %vm1677 = vcmp.gt.f32.partialorder %v1613, 0.0
  %vm1678 = vcmp.gt.f32.partialorder %v1614, 0.0
  %vm1679 = vcmp.gt.f32.partialorder %v1615, 0.0
  %vm1680 = vcmp.gt.f32.partialorder %v1616, 0.0
  %vm1681 = vcmp.gt.f32.partialorder %v1617, 0.0
  %vm1682 = vcmp.gt.f32.partialorder %v1618, 0.0
  %vm1683 = vcmp.gt.f32.partialorder %v1619, 0.0
  %vm1684 = vcmp.gt.f32.partialorder %v1620, 0.0
  %vm1685 = vcmp.gt.f32.partialorder %v1621, 0.0
  %vm1686 = vcmp.gt.f32.partialorder %v1622, 0.0
  %vm1687 = vcmp.gt.f32.partialorder %v1623, 0.0
  %vm1688 = vcmp.gt.f32.partialorder %v1624, 0.0
  %vm1689 = vcmp.gt.f32.partialorder %v1625, 0.0
  %vm1690 = vcmp.gt.f32.partialorder %v1626, 0.0
  %vm1691 = vcmp.gt.f32.partialorder %v1627, 0.0
  %vm1692 = vcmp.gt.f32.partialorder %v1628, 0.0
  %vm1693 = vcmp.gt.f32.partialorder %v1629, 0.0
  %vm1694 = vcmp.gt.f32.partialorder %v1630, 0.0
  %vm1695 = vcmp.gt.f32.partialorder %v1631, 0.0
  %vm1696 = vcmp.gt.f32.partialorder %v1632, 0.0
  %vm1697 = vcmp.gt.f32.partialorder %v1633, 0.0
  %vm1698 = vcmp.gt.f32.partialorder %v1634, 0.0
  %vm1699 = vcmp.gt.f32.partialorder %v1635, 0.0
  %vm1700 = vcmp.gt.f32.partialorder %v1636, 0.0
  %vm1701 = vcmp.gt.f32.partialorder %v1637, 0.0
  %vm1702 = vcmp.gt.f32.partialorder %v1638, 0.0
  %vm1703 = vcmp.gt.f32.partialorder %v1639, 0.0
  %vm1704 = vcmp.gt.f32.partialorder %v1640, 0.0
  %vm1705 = vcmp.gt.f32.partialorder %v1641, 0.0
  %vm1706 = vcmp.gt.f32.partialorder %v1642, 0.0
  %vm1707 = vcmp.gt.f32.partialorder %v1643, 0.0
  %vm1708 = vcmp.gt.f32.partialorder %v1644, 0.0
  %vm1709 = vcmp.gt.f32.partialorder %v1645, 0.0
  %vm1710 = vcmp.gt.f32.partialorder %v1646, 0.0
  %vm1711 = vcmp.gt.f32.partialorder %v1647, 0.0
  %vm1712 = vcmp.gt.f32.partialorder %v1648, 0.0
  %v1713 = vmul.f32 %v1585, 0.2
  %v1714 = vmul.f32 %v1586, 0.2
  %v1715 = vmul.f32 %v1587, 0.2
  %v1716 = vmul.f32 %v1588, 0.2
  %v1717 = vmul.f32 %v1589, 0.2
  %v1718 = vmul.f32 %v1590, 0.2
  %v1719 = vmul.f32 %v1591, 0.2
  %v1720 = vmul.f32 %v1592, 0.2
  %v1721 = vmul.f32 %v1593, 0.2
  %v1722 = vmul.f32 %v1594, 0.2
  %v1723 = vmul.f32 %v1595, 0.2
  %v1724 = vmul.f32 %v1596, 0.2
  %v1725 = vmul.f32 %v1597, 0.2
  %v1726 = vmul.f32 %v1598, 0.2
  %v1727 = vmul.f32 %v1599, 0.2
  %v1728 = vmul.f32 %v1600, 0.2
  %v1729 = vmul.f32 %v1601, 0.2
  %v1730 = vmul.f32 %v1602, 0.2
  %v1731 = vmul.f32 %v1603, 0.2
  %v1732 = vmul.f32 %v1604, 0.2
  %v1733 = vmul.f32 %v1605, 0.2
  %v1734 = vmul.f32 %v1606, 0.2
  %v1735 = vmul.f32 %v1607, 0.2
  %v1736 = vmul.f32 %v1608, 0.2
  %v1737 = vmul.f32 %v1609, 0.2
  %v1738 = vmul.f32 %v1610, 0.2
  %v1739 = vmul.f32 %v1611, 0.2
  %v1740 = vmul.f32 %v1612, 0.2
  %v1741 = vmul.f32 %v1613, 0.2
  %v1742 = vmul.f32 %v1614, 0.2
  %v1743 = vmul.f32 %v1615, 0.2
  %v1744 = vmul.f32 %v1616, 0.2
  %v1745 = vmul.f32 %v1617, 0.2
  %v1746 = vmul.f32 %v1618, 0.2
  %v1747 = vmul.f32 %v1619, 0.2
  %v1748 = vmul.f32 %v1620, 0.2
  %v1749 = vmul.f32 %v1621, 0.2
  %v1750 = vmul.f32 %v1622, 0.2
  %v1751 = vmul.f32 %v1623, 0.2
  %v1752 = vmul.f32 %v1624, 0.2
  %v1753 = vmul.f32 %v1625, 0.2
  %v1754 = vmul.f32 %v1626, 0.2
  %v1755 = vmul.f32 %v1627, 0.2
  %v1756 = vmul.f32 %v1628, 0.2
  %v1757 = vmul.f32 %v1629, 0.2
  %v1758 = vmul.f32 %v1630, 0.2
  %v1759 = vmul.f32 %v1631, 0.2
  %v1760 = vmul.f32 %v1632, 0.2
  %v1761 = vmul.f32 %v1633, 0.2
  %v1762 = vmul.f32 %v1634, 0.2
  %v1763 = vmul.f32 %v1635, 0.2
  %v1764 = vmul.f32 %v1636, 0.2
  %v1765 = vmul.f32 %v1637, 0.2
  %v1766 = vmul.f32 %v1638, 0.2
  %v1767 = vmul.f32 %v1639, 0.2
  %v1768 = vmul.f32 %v1640, 0.2
  %v1769 = vmul.f32 %v1641, 0.2
  %v1770 = vmul.f32 %v1642, 0.2
  %v1771 = vmul.f32 %v1643, 0.2
  %v1772 = vmul.f32 %v1644, 0.2
  %v1773 = vmul.f32 %v1645, 0.2
  %v1774 = vmul.f32 %v1646, 0.2
  %v1775 = vmul.f32 %v1647, 0.2
  %v1776 = vmul.f32 %v1648, 0.2
  %v1777 = vsel %vm1649, %v1585, %v1713
  %v1778 = vsel %vm1650, %v1586, %v1714
  %v1779 = vsel %vm1651, %v1587, %v1715
  %v1780 = vsel %vm1652, %v1588, %v1716
  %v1781 = vsel %vm1653, %v1589, %v1717
  %v1782 = vsel %vm1654, %v1590, %v1718
  %v1783 = vsel %vm1655, %v1591, %v1719
  %v1784 = vsel %vm1656, %v1592, %v1720
  %v1785 = vsel %vm1657, %v1593, %v1721
  %v1786 = vsel %vm1658, %v1594, %v1722
  %v1787 = vsel %vm1659, %v1595, %v1723
  %v1788 = vsel %vm1660, %v1596, %v1724
  %v1789 = vsel %vm1661, %v1597, %v1725
  %v1790 = vsel %vm1662, %v1598, %v1726
  %v1791 = vsel %vm1663, %v1599, %v1727
  %v1792 = vsel %vm1664, %v1600, %v1728
  %v1793 = vsel %vm1665, %v1601, %v1729
  %v1794 = vsel %vm1666, %v1602, %v1730
  %v1795 = vsel %vm1667, %v1603, %v1731
  %v1796 = vsel %vm1668, %v1604, %v1732
  %v1797 = vsel %vm1669, %v1605, %v1733
  %v1798 = vsel %vm1670, %v1606, %v1734
  %v1799 = vsel %vm1671, %v1607, %v1735
  %v1800 = vsel %vm1672, %v1608, %v1736
  %v1801 = vsel %vm1673, %v1609, %v1737
  %v1802 = vsel %vm1674, %v1610, %v1738
  %v1803 = vsel %vm1675, %v1611, %v1739
  %v1804 = vsel %vm1676, %v1612, %v1740
  %v1805 = vsel %vm1677, %v1613, %v1741
  %v1806 = vsel %vm1678, %v1614, %v1742
  %v1807 = vsel %vm1679, %v1615, %v1743
  %v1808 = vsel %vm1680, %v1616, %v1744
  %v1809 = vsel %vm1681, %v1617, %v1745
  %v1810 = vsel %vm1682, %v1618, %v1746
  %v1811 = vsel %vm1683, %v1619, %v1747
  %v1812 = vsel %vm1684, %v1620, %v1748
  %v1813 = vsel %vm1685, %v1621, %v1749
  %v1814 = vsel %vm1686, %v1622, %v1750
  %v1815 = vsel %vm1687, %v1623, %v1751
  %v1816 = vsel %vm1688, %v1624, %v1752
  %v1817 = vsel %vm1689, %v1625, %v1753
  %v1818 = vsel %vm1690, %v1626, %v1754
  %v1819 = vsel %vm1691, %v1627, %v1755
  %v1820 = vsel %vm1692, %v1628, %v1756
  %v1821 = vsel %vm1693, %v1629, %v1757
  %v1822 = vsel %vm1694, %v1630, %v1758
  %v1823 = vsel %vm1695, %v1631, %v1759
  %v1824 = vsel %vm1696, %v1632, %v1760
  %v1825 = vsel %vm1697, %v1633, %v1761
  %v1826 = vsel %vm1698, %v1634, %v1762
  %v1827 = vsel %vm1699, %v1635, %v1763
  %v1828 = vsel %vm1700, %v1636, %v1764
  %v1829 = vsel %vm1701, %v1637, %v1765
  %v1830 = vsel %vm1702, %v1638, %v1766
  %v1831 = vsel %vm1703, %v1639, %v1767
  %v1832 = vsel %vm1704, %v1640, %v1768
  %v1833 = vsel %vm1705, %v1641, %v1769
  %v1834 = vsel %vm1706, %v1642, %v1770
  %v1835 = vsel %vm1707, %v1643, %v1771
  %v1836 = vsel %vm1708, %v1644, %v1772
  %v1837 = vsel %vm1709, %v1645, %v1773
  %v1838 = vsel %vm1710, %v1646, %v1774
  %v1839 = vsel %vm1711, %v1647, %v1775
  %v1840 = vsel %vm1712, %v1648, %v1776
  %v1841 = vmul.f32 %v1777, %v726
  %v1842 = vmul.f32 %v1778, %v731
  %v1843 = vmul.f32 %v1779, %v736
  %v1844 = vmul.f32 %v1780, %v741
  %v1845 = vmul.f32 %v1781, %v746
  %v1846 = vmul.f32 %v1782, %v751
  %v1847 = vmul.f32 %v1783, %v756
  %v1848 = vmul.f32 %v1784, %v761
  %v1849 = vmul.f32 %v1785, %v766
  %v1850 = vmul.f32 %v1786, %v771
  %v1851 = vmul.f32 %v1787, %v776
  %v1852 = vmul.f32 %v1788, %v781
  %v1853 = vmul.f32 %v1789, %v786
  %v1854 = vmul.f32 %v1790, %v791
  %v1855 = vmul.f32 %v1791, %v796
  %v1856 = vmul.f32 %v1792, %v801
  %v1857 = vmul.f32 %v1793, %v806
  %v1858 = vmul.f32 %v1794, %v811
  %v1859 = vmul.f32 %v1795, %v816
  %v1860 = vmul.f32 %v1796, %v821
  %v1861 = vmul.f32 %v1797, %v826
  %v1862 = vmul.f32 %v1798, %v831
  %v1863 = vmul.f32 %v1799, %v836
  %v1864 = vmul.f32 %v1800, %v841
  %v1865 = vmul.f32 %v1801, %v846
  %v1866 = vmul.f32 %v1802, %v851
  %v1867 = vmul.f32 %v1803, %v856
  %v1868 = vmul.f32 %v1804, %v861
  %v1869 = vmul.f32 %v1805, %v866
  %v1870 = vmul.f32 %v1806, %v871
  %v1871 = vmul.f32 %v1807, %v876
  %v1872 = vmul.f32 %v1808, %v881
  %v1873 = vmul.f32 %v1809, %v886
  %v1874 = vmul.f32 %v1810, %v891
  %v1875 = vmul.f32 %v1811, %v896
  %v1876 = vmul.f32 %v1812, %v901
  %v1877 = vmul.f32 %v1813, %v906
  %v1878 = vmul.f32 %v1814, %v911
  %v1879 = vmul.f32 %v1815, %v916
  %v1880 = vmul.f32 %v1816, %v921
  %v1881 = vmul.f32 %v1817, %v926
  %v1882 = vmul.f32 %v1818, %v931
  %v1883 = vmul.f32 %v1819, %v936
  %v1884 = vmul.f32 %v1820, %v941
  %v1885 = vmul.f32 %v1821, %v946
  %v1886 = vmul.f32 %v1822, %v951
  %v1887 = vmul.f32 %v1823, %v956
  %v1888 = vmul.f32 %v1824, %v961
  %v1889 = vmul.f32 %v1825, %v966
  %v1890 = vmul.f32 %v1826, %v971
  %v1891 = vmul.f32 %v1827, %v976
  %v1892 = vmul.f32 %v1828, %v981
  %v1893 = vmul.f32 %v1829, %v986
  %v1894 = vmul.f32 %v1830, %v991
  %v1895 = vmul.f32 %v1831, %v996
  %v1896 = vmul.f32 %v1832, %v1001
  %v1897 = vmul.f32 %v1833, %v1006
  %v1898 = vmul.f32 %v1834, %v1011
  %v1899 = vmul.f32 %v1835, %v1016
  %v1900 = vmul.f32 %v1836, %v1021
  %v1901 = vmul.f32 %v1837, %v1026
  %v1902 = vmul.f32 %v1838, %v1031
  %v1903 = vmul.f32 %v1839, %v1036
  %v1904 = vmul.f32 %v1840, %v1041
  %v1919 = vrot.slane %v1841, 1
  %v1920 = vrot.slane %v1843, 1
  %v1921 = vrot.slane %v1845, 1
  %v1922 = vrot.slane %v1847, 1
  %v1923 = vrot.slane %v1849, 1
  %v1924 = vrot.slane %v1851, 1
  %v1925 = vrot.slane %v1853, 1
  %v1926 = vrot.slane %v1873, 1
  %v1927 = vrot.slane %v1875, 1
  %v1928 = vrot.slane %v1877, 1
  %v1929 = vrot.slane %v1879, 1
  %v1930 = vrot.slane %v1881, 1
  %v1931 = vrot.slane %v1883, 1
  %v1932 = vrot.slane %v1885, 1
  %vm1947 = vcmask 1046528
  %v1948 = vsel %vm1947, %v1919, 0.0
  %v1949 = vsel %vm1947, %v1920, 0.0
  %v1950 = vsel %vm1947, %v1921, 0.0
  %v1951 = vsel %vm1947, %v1922, 0.0
  %v1952 = vsel %vm1947, %v1923, 0.0
  %v1953 = vsel %vm1947, %v1924, 0.0
  %v1954 = vsel %vm1947, %v1925, 0.0
  %v1955 = vsel %vm1947, %v1926, 0.0
  %v1956 = vsel %vm1947, %v1927, 0.0
  %v1957 = vsel %vm1947, %v1928, 0.0
  %v1958 = vsel %vm1947, %v1929, 0.0
  %v1959 = vsel %vm1947, %v1930, 0.0
  %v1960 = vsel %vm1947, %v1931, 0.0
  %v1961 = vsel %vm1947, %v1932, 0.0
  %v1976 = vrot.slane %v1842, 1
  %v1977 = vrot.slane %v1844, 1
  %v1978 = vrot.slane %v1846, 1
  %v1979 = vrot.slane %v1848, 1
  %v1980 = vrot.slane %v1850, 1
  %v1981 = vrot.slane %v1852, 1
  %v1982 = vrot.slane %v1854, 1
  %v1983 = vrot.slane %v1874, 1
  %v1984 = vrot.slane %v1876, 1
  %v1985 = vrot.slane %v1878, 1
  %v1986 = vrot.slane %v1880, 1
  %v1987 = vrot.slane %v1882, 1
  %v1988 = vrot.slane %v1884, 1
  %v1989 = vrot.slane %v1886, 1
  %v2004 = vsel %vm1947, %v1976, 0.0
  %v2005 = vsel %vm1947, %v1977, 0.0
  %v2006 = vsel %vm1947, %v1978, 0.0
  %v2007 = vsel %vm1947, %v1979, 0.0
  %v2008 = vsel %vm1947, %v1980, 0.0
  %v2009 = vsel %vm1947, %v1981, 0.0
  %v2010 = vsel %vm1947, %v1982, 0.0
  %v2011 = vsel %vm1947, %v1983, 0.0
  %v2012 = vsel %vm1947, %v1984, 0.0
  %v2013 = vsel %vm1947, %v1985, 0.0
  %v2014 = vsel %vm1947, %v1986, 0.0
  %v2015 = vsel %vm1947, %v1987, 0.0
  %v2016 = vsel %vm1947, %v1988, 0.0
  %v2017 = vsel %vm1947, %v1989, 0.0
  %v2032 = vrot.slane %v1857, 1
  %v2033 = vrot.slane %v1859, 1
  %v2034 = vrot.slane %v1861, 1
  %v2035 = vrot.slane %v1863, 1
  %v2036 = vrot.slane %v1865, 1
  %v2037 = vrot.slane %v1867, 1
  %v2038 = vrot.slane %v1869, 1
  %v2039 = vrot.slane %v1889, 1
  %v2040 = vrot.slane %v1891, 1
  %v2041 = vrot.slane %v1893, 1
  %v2042 = vrot.slane %v1895, 1
  %v2043 = vrot.slane %v1897, 1
  %v2044 = vrot.slane %v1899, 1
  %v2045 = vrot.slane %v1901, 1
  %v2060 = vsel %vm1947, %v2032, 0.0
  %v2061 = vsel %vm1947, %v2033, 0.0
  %v2062 = vsel %vm1947, %v2034, 0.0
  %v2063 = vsel %vm1947, %v2035, 0.0
  %v2064 = vsel %vm1947, %v2036, 0.0
  %v2065 = vsel %vm1947, %v2037, 0.0
  %v2066 = vsel %vm1947, %v2038, 0.0
  %v2067 = vsel %vm1947, %v2039, 0.0
  %v2068 = vsel %vm1947, %v2040, 0.0
  %v2069 = vsel %vm1947, %v2041, 0.0
  %v2070 = vsel %vm1947, %v2042, 0.0
  %v2071 = vsel %vm1947, %v2043, 0.0
  %v2072 = vsel %vm1947, %v2044, 0.0
  %v2073 = vsel %vm1947, %v2045, 0.0
  %v2088 = vrot.slane %v1858, 1
  %v2089 = vrot.slane %v1860, 1
  %v2090 = vrot.slane %v1862, 1
  %v2091 = vrot.slane %v1864, 1
  %v2092 = vrot.slane %v1866, 1
  %v2093 = vrot.slane %v1868, 1
  %v2094 = vrot.slane %v1870, 1
  %v2095 = vrot.slane %v1890, 1
  %v2096 = vrot.slane %v1892, 1
  %v2097 = vrot.slane %v1894, 1
  %v2098 = vrot.slane %v1896, 1
  %v2099 = vrot.slane %v1898, 1
  %v2100 = vrot.slane %v1900, 1
  %v2101 = vrot.slane %v1902, 1
  %v2116 = vsel %vm1947, %v2088, 0.0
  %v2117 = vsel %vm1947, %v2089, 0.0
  %v2118 = vsel %vm1947, %v2090, 0.0
  %v2119 = vsel %vm1947, %v2091, 0.0
  %v2120 = vsel %vm1947, %v2092, 0.0
  %v2121 = vsel %vm1947, %v2093, 0.0
  %v2122 = vsel %vm1947, %v2094, 0.0
  %v2123 = vsel %vm1947, %v2095, 0.0
  %v2124 = vsel %vm1947, %v2096, 0.0
  %v2125 = vsel %vm1947, %v2097, 0.0
  %v2126 = vsel %vm1947, %v2098, 0.0
  %v2127 = vsel %vm1947, %v2099, 0.0
  %v2128 = vsel %vm1947, %v2100, 0.0
  %v2129 = vsel %vm1947, %v2101, 0.0
  %v2132 = vrot.slane %v1855, 1
  %v2133 = vrot.slane %v1887, 1
  %v2136 = vsel %vm1947, %v2132, 0.0
  %v2137 = vsel %vm1947, %v2133, 0.0
  %v2140 = vrot.slane %v1856, 1
  %v2141 = vrot.slane %v1888, 1
  %v2144 = vsel %vm1947, %v2140, 0.0
  %v2145 = vsel %vm1947, %v2141, 0.0
  %v2148 = vrot.slane %v1871, 1
  %v2149 = vrot.slane %v1903, 1
  %v2152 = vsel %vm1947, %v2148, 0.0
  %v2153 = vsel %vm1947, %v2149, 0.0
  %v2156 = vrot.slane %v1872, 1
  %v2157 = vrot.slane %v1904, 1
  %v2160 = vsel %vm1947, %v2156, 0.0
  %v2161 = vsel %vm1947, %v2157, 0.0
  %2162 = vrot.lane.b32.xlu0 %v1842, 16
  %v2163 = vpop.permute.xlu0 %2162
  %2164 = vrot.lane.b32.xlu0 %v1844, 16
  %v2165 = vpop.permute.xlu0 %2164
  %2166 = vrot.lane.b32.xlu0 %v1846, 16
  %v2167 = vpop.permute.xlu0 %2166
  %2168 = vrot.lane.b32.xlu0 %v1848, 16
  %v2169 = vpop.permute.xlu0 %2168
  %2170 = vrot.lane.b32.xlu0 %v1850, 16
  %v2171 = vpop.permute.xlu0 %2170
  %2172 = vrot.lane.b32.xlu0 %v1852, 16
  %v2173 = vpop.permute.xlu0 %2172
  %2174 = vrot.lane.b32.xlu0 %v1854, 16
  %v2175 = vpop.permute.xlu0 %2174
  %2176 = vrot.lane.b32.xlu0 %v1874, 16
  %v2177 = vpop.permute.xlu0 %2176
  %2178 = vrot.lane.b32.xlu0 %v1876, 16
  %v2179 = vpop.permute.xlu0 %2178
  %2180 = vrot.lane.b32.xlu0 %v1878, 16
  %v2181 = vpop.permute.xlu0 %2180
  %2182 = vrot.lane.b32.xlu0 %v1880, 16
  %v2183 = vpop.permute.xlu0 %2182
  %2184 = vrot.lane.b32.xlu0 %v1882, 16
  %v2185 = vpop.permute.xlu0 %2184
  %2186 = vrot.lane.b32.xlu0 %v1884, 16
  %v2187 = vpop.permute.xlu0 %2186
  %2188 = vrot.lane.b32.xlu0 %v1886, 16
  %v2189 = vpop.permute.xlu0 %2188
  %2218 = vrot.lane.b32.xlu0 %v1948, 32
  %v2219 = vpop.permute.xlu0 %2218
  %2220 = vrot.lane.b32.xlu0 %v1949, 32
  %v2221 = vpop.permute.xlu0 %2220
  %2222 = vrot.lane.b32.xlu0 %v1950, 32
  %v2223 = vpop.permute.xlu0 %2222
  %2224 = vrot.lane.b32.xlu0 %v1951, 32
  %v2225 = vpop.permute.xlu0 %2224
  %2226 = vrot.lane.b32.xlu0 %v1952, 32
  %v2227 = vpop.permute.xlu0 %2226
  %2228 = vrot.lane.b32.xlu0 %v1953, 32
  %v2229 = vpop.permute.xlu0 %2228
  %2230 = vrot.lane.b32.xlu0 %v1954, 32
  %v2231 = vpop.permute.xlu0 %2230
  %2232 = vrot.lane.b32.xlu0 %v1955, 32
  %v2233 = vpop.permute.xlu0 %2232
  %2234 = vrot.lane.b32.xlu0 %v1956, 32
  %v2235 = vpop.permute.xlu0 %2234
  %2236 = vrot.lane.b32.xlu0 %v1957, 32
  %v2237 = vpop.permute.xlu0 %2236
  %2238 = vrot.lane.b32.xlu0 %v1958, 32
  %v2239 = vpop.permute.xlu0 %2238
  %2240 = vrot.lane.b32.xlu0 %v1959, 32
  %v2241 = vpop.permute.xlu0 %2240
  %2242 = vrot.lane.b32.xlu0 %v1960, 32
  %v2243 = vpop.permute.xlu0 %2242
  %2244 = vrot.lane.b32.xlu0 %v1961, 32
  %v2245 = vpop.permute.xlu0 %2244
  %2274 = vrot.lane.b32.xlu0 %v2004, 48
  %v2275 = vpop.permute.xlu0 %2274
  %2276 = vrot.lane.b32.xlu0 %v2005, 48
  %v2277 = vpop.permute.xlu0 %2276
  %2278 = vrot.lane.b32.xlu0 %v2006, 48
  %v2279 = vpop.permute.xlu0 %2278
  %2280 = vrot.lane.b32.xlu0 %v2007, 48
  %v2281 = vpop.permute.xlu0 %2280
  %2282 = vrot.lane.b32.xlu0 %v2008, 48
  %v2283 = vpop.permute.xlu0 %2282
  %2284 = vrot.lane.b32.xlu0 %v2009, 48
  %v2285 = vpop.permute.xlu0 %2284
  %2286 = vrot.lane.b32.xlu0 %v2010, 48
  %v2287 = vpop.permute.xlu0 %2286
  %2288 = vrot.lane.b32.xlu0 %v2011, 48
  %v2289 = vpop.permute.xlu0 %2288
  %2290 = vrot.lane.b32.xlu0 %v2012, 48
  %v2291 = vpop.permute.xlu0 %2290
  %2292 = vrot.lane.b32.xlu0 %v2013, 48
  %v2293 = vpop.permute.xlu0 %2292
  %2294 = vrot.lane.b32.xlu0 %v2014, 48
  %v2295 = vpop.permute.xlu0 %2294
  %2296 = vrot.lane.b32.xlu0 %v2015, 48
  %v2297 = vpop.permute.xlu0 %2296
  %2298 = vrot.lane.b32.xlu0 %v2016, 48
  %v2299 = vpop.permute.xlu0 %2298
  %2300 = vrot.lane.b32.xlu0 %v2017, 48
  %v2301 = vpop.permute.xlu0 %2300
  %2316 = vrot.lane.b32.xlu0 %v1857, 64
  %v2317 = vpop.permute.xlu0 %2316
  %2318 = vrot.lane.b32.xlu0 %v1859, 64
  %v2319 = vpop.permute.xlu0 %2318
  %2320 = vrot.lane.b32.xlu0 %v1861, 64
  %v2321 = vpop.permute.xlu0 %2320
  %2322 = vrot.lane.b32.xlu0 %v1863, 64
  %v2323 = vpop.permute.xlu0 %2322
  %2324 = vrot.lane.b32.xlu0 %v1865, 64
  %v2325 = vpop.permute.xlu0 %2324
  %2326 = vrot.lane.b32.xlu0 %v1867, 64
  %v2327 = vpop.permute.xlu0 %2326
  %2328 = vrot.lane.b32.xlu0 %v1869, 64
  %v2329 = vpop.permute.xlu0 %2328
  %2330 = vrot.lane.b32.xlu0 %v1889, 64
  %v2331 = vpop.permute.xlu0 %2330
  %2332 = vrot.lane.b32.xlu0 %v1891, 64
  %v2333 = vpop.permute.xlu0 %2332
  %2334 = vrot.lane.b32.xlu0 %v1893, 64
  %v2335 = vpop.permute.xlu0 %2334
  %2336 = vrot.lane.b32.xlu0 %v1895, 64
  %v2337 = vpop.permute.xlu0 %2336
  %2338 = vrot.lane.b32.xlu0 %v1897, 64
  %v2339 = vpop.permute.xlu0 %2338
  %2340 = vrot.lane.b32.xlu0 %v1899, 64
  %v2341 = vpop.permute.xlu0 %2340
  %2342 = vrot.lane.b32.xlu0 %v1901, 64
  %v2343 = vpop.permute.xlu0 %2342
  %2358 = vrot.lane.b32.xlu0 %v1858, 80
  %v2359 = vpop.permute.xlu0 %2358
  %2360 = vrot.lane.b32.xlu0 %v1860, 80
  %v2361 = vpop.permute.xlu0 %2360
  %2362 = vrot.lane.b32.xlu0 %v1862, 80
  %v2363 = vpop.permute.xlu0 %2362
  %2364 = vrot.lane.b32.xlu0 %v1864, 80
  %v2365 = vpop.permute.xlu0 %2364
  %2366 = vrot.lane.b32.xlu0 %v1866, 80
  %v2367 = vpop.permute.xlu0 %2366
  %2368 = vrot.lane.b32.xlu0 %v1868, 80
  %v2369 = vpop.permute.xlu0 %2368
  %2370 = vrot.lane.b32.xlu0 %v1870, 80
  %v2371 = vpop.permute.xlu0 %2370
  %2372 = vrot.lane.b32.xlu0 %v1890, 80
  %v2373 = vpop.permute.xlu0 %2372
  %2374 = vrot.lane.b32.xlu0 %v1892, 80
  %v2375 = vpop.permute.xlu0 %2374
  %2376 = vrot.lane.b32.xlu0 %v1894, 80
  %v2377 = vpop.permute.xlu0 %2376
  %2378 = vrot.lane.b32.xlu0 %v1896, 80
  %v2379 = vpop.permute.xlu0 %2378
  %2380 = vrot.lane.b32.xlu0 %v1898, 80
  %v2381 = vpop.permute.xlu0 %2380
  %2382 = vrot.lane.b32.xlu0 %v1900, 80
  %v2383 = vpop.permute.xlu0 %2382
  %2384 = vrot.lane.b32.xlu0 %v1902, 80
  %v2385 = vpop.permute.xlu0 %2384
  %2414 = vrot.lane.b32.xlu0 %v2060, 96
  %v2415 = vpop.permute.xlu0 %2414
  %2416 = vrot.lane.b32.xlu0 %v2061, 96
  %v2417 = vpop.permute.xlu0 %2416
  %2418 = vrot.lane.b32.xlu0 %v2062, 96
  %v2419 = vpop.permute.xlu0 %2418
  %2420 = vrot.lane.b32.xlu0 %v2063, 96
  %v2421 = vpop.permute.xlu0 %2420
  %2422 = vrot.lane.b32.xlu0 %v2064, 96
  %v2423 = vpop.permute.xlu0 %2422
  %2424 = vrot.lane.b32.xlu0 %v2065, 96
  %v2425 = vpop.permute.xlu0 %2424
  %2426 = vrot.lane.b32.xlu0 %v2066, 96
  %v2427 = vpop.permute.xlu0 %2426
  %2428 = vrot.lane.b32.xlu0 %v2067, 96
  %v2429 = vpop.permute.xlu0 %2428
  %2430 = vrot.lane.b32.xlu0 %v2068, 96
  %v2431 = vpop.permute.xlu0 %2430
  %2432 = vrot.lane.b32.xlu0 %v2069, 96
  %v2433 = vpop.permute.xlu0 %2432
  %2434 = vrot.lane.b32.xlu0 %v2070, 96
  %v2435 = vpop.permute.xlu0 %2434
  %2436 = vrot.lane.b32.xlu0 %v2071, 96
  %v2437 = vpop.permute.xlu0 %2436
  %2438 = vrot.lane.b32.xlu0 %v2072, 96
  %v2439 = vpop.permute.xlu0 %2438
  %2440 = vrot.lane.b32.xlu0 %v2073, 96
  %v2441 = vpop.permute.xlu0 %2440
  %2470 = vrot.lane.b32.xlu0 %v2116, 112
  %v2471 = vpop.permute.xlu0 %2470
  %2472 = vrot.lane.b32.xlu0 %v2117, 112
  %v2473 = vpop.permute.xlu0 %2472
  %2474 = vrot.lane.b32.xlu0 %v2118, 112
  %v2475 = vpop.permute.xlu0 %2474
  %2476 = vrot.lane.b32.xlu0 %v2119, 112
  %v2477 = vpop.permute.xlu0 %2476
  %2478 = vrot.lane.b32.xlu0 %v2120, 112
  %v2479 = vpop.permute.xlu0 %2478
  %2480 = vrot.lane.b32.xlu0 %v2121, 112
  %v2481 = vpop.permute.xlu0 %2480
  %2482 = vrot.lane.b32.xlu0 %v2122, 112
  %v2483 = vpop.permute.xlu0 %2482
  %2484 = vrot.lane.b32.xlu0 %v2123, 112
  %v2485 = vpop.permute.xlu0 %2484
  %2486 = vrot.lane.b32.xlu0 %v2124, 112
  %v2487 = vpop.permute.xlu0 %2486
  %2488 = vrot.lane.b32.xlu0 %v2125, 112
  %v2489 = vpop.permute.xlu0 %2488
  %2490 = vrot.lane.b32.xlu0 %v2126, 112
  %v2491 = vpop.permute.xlu0 %2490
  %2492 = vrot.lane.b32.xlu0 %v2127, 112
  %v2493 = vpop.permute.xlu0 %2492
  %2494 = vrot.lane.b32.xlu0 %v2128, 112
  %v2495 = vpop.permute.xlu0 %2494
  %2496 = vrot.lane.b32.xlu0 %v2129, 112
  %v2497 = vpop.permute.xlu0 %2496
  %2512 = vrot.lane.b32.xlu0 %v1856, 16
  %v2513 = vpop.permute.xlu0 %2512
  %2514 = vrot.lane.b32.xlu0 %v1888, 16
  %v2515 = vpop.permute.xlu0 %2514
  %2520 = vrot.lane.b32.xlu0 %v2136, 32
  %v2521 = vpop.permute.xlu0 %2520
  %2522 = vrot.lane.b32.xlu0 %v2137, 32
  %v2523 = vpop.permute.xlu0 %2522
  %2528 = vrot.lane.b32.xlu0 %v2144, 48
  %v2529 = vpop.permute.xlu0 %2528
  %2530 = vrot.lane.b32.xlu0 %v2145, 48
  %v2531 = vpop.permute.xlu0 %2530
  %2534 = vrot.lane.b32.xlu0 %v1871, 64
  %v2535 = vpop.permute.xlu0 %2534
  %2536 = vrot.lane.b32.xlu0 %v1903, 64
  %v2537 = vpop.permute.xlu0 %2536
  %2540 = vrot.lane.b32.xlu0 %v1872, 80
  %v2541 = vpop.permute.xlu0 %2540
  %2542 = vrot.lane.b32.xlu0 %v1904, 80
  %v2543 = vpop.permute.xlu0 %2542
  %2548 = vrot.lane.b32.xlu0 %v2152, 96
  %v2549 = vpop.permute.xlu0 %2548
  %2550 = vrot.lane.b32.xlu0 %v2153, 96
  %v2551 = vpop.permute.xlu0 %2550
  %2556 = vrot.lane.b32.xlu0 %v2160, 112
  %v2557 = vpop.permute.xlu0 %2556
  %2558 = vrot.lane.b32.xlu0 %v2161, 112
  %v2559 = vpop.permute.xlu0 %2558
  %vm2562 = vcmask 130048
  %v2563 = vsel %vm2562, %v1841, %v2163
  %v2564 = vsel %vm2562, %v1843, %v2165
  %v2565 = vsel %vm2562, %v1845, %v2167
  %v2566 = vsel %vm2562, %v1847, %v2169
  %v2567 = vsel %vm2562, %v1849, %v2171
  %v2568 = vsel %vm2562, %v1851, %v2173
  %v2569 = vsel %vm2562, %v1853, %v2175
  %v2570 = vsel %vm2562, %v1873, %v2177
  %v2571 = vsel %vm2562, %v1875, %v2179
  %v2572 = vsel %vm2562, %v1877, %v2181
  %v2573 = vsel %vm2562, %v1879, %v2183
  %v2574 = vsel %vm2562, %v1881, %v2185
  %v2575 = vsel %vm2562, %v1883, %v2187
  %v2576 = vsel %vm2562, %v1885, %v2189
  %vm2577 = vcmask 261120
  %v2578 = vsel %vm2577, %v2563, %v2219
  %v2579 = vsel %vm2577, %v2564, %v2221
  %v2580 = vsel %vm2577, %v2565, %v2223
  %v2581 = vsel %vm2577, %v2566, %v2225
  %v2582 = vsel %vm2577, %v2567, %v2227
  %v2583 = vsel %vm2577, %v2568, %v2229
  %v2584 = vsel %vm2577, %v2569, %v2231
  %v2585 = vsel %vm2577, %v2570, %v2233
  %v2586 = vsel %vm2577, %v2571, %v2235
  %v2587 = vsel %vm2577, %v2572, %v2237
  %v2588 = vsel %vm2577, %v2573, %v2239
  %v2589 = vsel %vm2577, %v2574, %v2241
  %v2590 = vsel %vm2577, %v2575, %v2243
  %v2591 = vsel %vm2577, %v2576, %v2245
  %vm2592 = vcmask 392192
  %v2593 = vsel %vm2592, %v2578, %v2275
  %v2594 = vsel %vm2592, %v2579, %v2277
  %v2595 = vsel %vm2592, %v2580, %v2279
  %v2596 = vsel %vm2592, %v2581, %v2281
  %v2597 = vsel %vm2592, %v2582, %v2283
  %v2598 = vsel %vm2592, %v2583, %v2285
  %v2599 = vsel %vm2592, %v2584, %v2287
  %v2600 = vsel %vm2592, %v2585, %v2289
  %v2601 = vsel %vm2592, %v2586, %v2291
  %v2602 = vsel %vm2592, %v2587, %v2293
  %v2603 = vsel %vm2592, %v2588, %v2295
  %v2604 = vsel %vm2592, %v2589, %v2297
  %v2605 = vsel %vm2592, %v2590, %v2299
  %v2606 = vsel %vm2592, %v2591, %v2301
  %vm2607 = vcmask 523264
  %v2608 = vsel %vm2607, %v2593, %v2317
  %v2609 = vsel %vm2607, %v2594, %v2319
  %v2610 = vsel %vm2607, %v2595, %v2321
  %v2611 = vsel %vm2607, %v2596, %v2323
  %v2612 = vsel %vm2607, %v2597, %v2325
  %v2613 = vsel %vm2607, %v2598, %v2327
  %v2614 = vsel %vm2607, %v2599, %v2329
  %v2615 = vsel %vm2607, %v2600, %v2331
  %v2616 = vsel %vm2607, %v2601, %v2333
  %v2617 = vsel %vm2607, %v2602, %v2335
  %v2618 = vsel %vm2607, %v2603, %v2337
  %v2619 = vsel %vm2607, %v2604, %v2339
  %v2620 = vsel %vm2607, %v2605, %v2341
  %v2621 = vsel %vm2607, %v2606, %v2343
  %vm2622 = vcmask 654336
  %v2623 = vsel %vm2622, %v2608, %v2359
  %v2624 = vsel %vm2622, %v2609, %v2361
  %v2625 = vsel %vm2622, %v2610, %v2363
  %v2626 = vsel %vm2622, %v2611, %v2365
  %v2627 = vsel %vm2622, %v2612, %v2367
  %v2628 = vsel %vm2622, %v2613, %v2369
  %v2629 = vsel %vm2622, %v2614, %v2371
  %v2630 = vsel %vm2622, %v2615, %v2373
  %v2631 = vsel %vm2622, %v2616, %v2375
  %v2632 = vsel %vm2622, %v2617, %v2377
  %v2633 = vsel %vm2622, %v2618, %v2379
  %v2634 = vsel %vm2622, %v2619, %v2381
  %v2635 = vsel %vm2622, %v2620, %v2383
  %v2636 = vsel %vm2622, %v2621, %v2385
  %vm2637 = vcmask 785408
  %v2638 = vsel %vm2637, %v2623, %v2415
  %v2639 = vsel %vm2637, %v2624, %v2417
  %v2640 = vsel %vm2637, %v2625, %v2419
  %v2641 = vsel %vm2637, %v2626, %v2421
  %v2642 = vsel %vm2637, %v2627, %v2423
  %v2643 = vsel %vm2637, %v2628, %v2425
  %v2644 = vsel %vm2637, %v2629, %v2427
  %v2645 = vsel %vm2637, %v2630, %v2429
  %v2646 = vsel %vm2637, %v2631, %v2431
  %v2647 = vsel %vm2637, %v2632, %v2433
  %v2648 = vsel %vm2637, %v2633, %v2435
  %v2649 = vsel %vm2637, %v2634, %v2437
  %v2650 = vsel %vm2637, %v2635, %v2439
  %v2651 = vsel %vm2637, %v2636, %v2441
  %vm2652 = vcmask 916480
  %v2653 = vsel %vm2652, %v2638, %v2471
  %v2654 = vsel %vm2652, %v2639, %v2473
  %v2655 = vsel %vm2652, %v2640, %v2475
  %v2656 = vsel %vm2652, %v2641, %v2477
  %v2657 = vsel %vm2652, %v2642, %v2479
  %v2658 = vsel %vm2652, %v2643, %v2481
  %v2659 = vsel %vm2652, %v2644, %v2483
  %v2660 = vsel %vm2652, %v2645, %v2485
  %v2661 = vsel %vm2652, %v2646, %v2487
  %v2662 = vsel %vm2652, %v2647, %v2489
  %v2663 = vsel %vm2652, %v2648, %v2491
  %v2664 = vsel %vm2652, %v2649, %v2493
  %v2665 = vsel %vm2652, %v2650, %v2495
  %v2666 = vsel %vm2652, %v2651, %v2497
  %v2667 = vsel %vm2562, %v1855, %v2513
  %v2668 = vsel %vm2562, %v1887, %v2515
  %v2669 = vsel %vm2577, %v2667, %v2521
  %v2670 = vsel %vm2577, %v2668, %v2523
  %v2671 = vsel %vm2592, %v2669, %v2529
  %v2672 = vsel %vm2592, %v2670, %v2531
  %v2673 = vsel %vm2607, %v2671, %v2535
  %v2674 = vsel %vm2607, %v2672, %v2537
  %v2675 = vsel %vm2622, %v2673, %v2541
  %v2676 = vsel %vm2622, %v2674, %v2543
  %v2677 = vsel %vm2637, %v2675, %v2549
  %v2678 = vsel %vm2637, %v2676, %v2551
  %v2679 = vsel %vm2652, %v2677, %v2557
  %v2680 = vsel %vm2652, %v2678, %v2559
  %v2681 = vpack.c.bf16 %v2654, %v2653
  %v2682 = vpack.c.bf16 %v2655, %v2654
  %v2683 = vpack.c.bf16 %v2656, %v2655
  %v2684 = vpack.c.bf16 %v2657, %v2656
  %v2685 = vpack.c.bf16 %v2658, %v2657
  %v2686 = vpack.c.bf16 %v2659, %v2658
  %v2687 = vpack.c.bf16 %v2660, %v2659
  %v2688 = vpack.c.bf16 %v2661, %v2679
  %v2689 = vpack.c.bf16 %v2662, %v2661
  %v2690 = vpack.c.bf16 %v2663, %v2662
  %v2691 = vpack.c.bf16 %v2664, %v2663
  %v2692 = vpack.c.bf16 %v2665, %v2664
  %v2693 = vpack.c.bf16 %v2666, %v2665
  %v2694 = vpack.c.bf16 %v2680, %v2666
  %v2695 = vld [vmem:[%s5] sm:$0xf]
  %v2696 = vld [vmem:[%s5 + $0x4] sm:$0xf]
  %v2697 = vld [vmem:[%s5 + $0x8] sm:$0xf]
  %v2698 = vld [vmem:[%s5 + $0xc] sm:$0xf]
  %v2699 = vld [vmem:[%s5 + $0x10] sm:$0xf]
  %v2700 = vld [vmem:[%s5 + $0x14] sm:$0xf]
  %v2701 = vld [vmem:[%s5 + $0x18] sm:$0xf]
  %v2702 = vld [vmem:[%s5 + $0x1c] sm:$0xf]
  %v2703 = vld [vmem:[%s5 + $0x20] sm:$0xf]
  %v2704 = vld [vmem:[%s5 + $0x24] sm:$0xf]
  %v2705 = vld [vmem:[%s5 + $0x28] sm:$0xf]
  %v2706 = vld [vmem:[%s5 + $0x2c] sm:$0xf]
  %v2707 = vld [vmem:[%s5 + $0x30] sm:$0xf]
  %v2708 = vld [vmem:[%s5 + $0x34] sm:$0xf]
  %v2709 = vld [vmem:[%s5 + $0x38] sm:$0xf]
  %v2710 = vld [vmem:[%s5 + $0x3c] sm:$0xf]
  %v2711 = vld [vmem:[%s5 + $0x40] sm:$0xf]
  %v2712 = vld [vmem:[%s5 + $0x44] sm:$0xf]
  %v2713 = vld [vmem:[%s5 + $0x48] sm:$0xf]
  %v2714 = vld [vmem:[%s5 + $0x4c] sm:$0xf]
  %v2715 = vld [vmem:[%s5 + $0x50] sm:$0xf]
  %v2716 = vld [vmem:[%s5 + $0x54] sm:$0xf]
  %v2717 = vld [vmem:[%s5 + $0x58] sm:$0xf]
  %v2718 = vld [vmem:[%s5 + $0x5c] sm:$0xf]
  %v2719 = vld [vmem:[%s5 + $0x60] sm:$0xf]
  %v2720 = vld [vmem:[%s5 + $0x64] sm:$0xf]
  %v2721 = vld [vmem:[%s5 + $0x68] sm:$0xf]
  %v2722 = vld [vmem:[%s5 + $0x6c] sm:$0xf]
  %v2723 = vld [vmem:[%s5 + $0x70] sm:$0xf]
  %v2724 = vld [vmem:[%s5 + $0x74] sm:$0xf]
  %v2725 = vld [vmem:[%s5 + $0x78] sm:$0xf]
  %v2726 = vld [vmem:[%s5 + $0x7c] sm:$0xf]
  %v2759 = vunpack.c.l.b16 %v2695
  %v2760 = vunpack.c.l.b16 %v2696
  %v2761 = vunpack.c.l.b16 %v2697
  %v2762 = vunpack.c.l.b16 %v2698
  %v2763 = vunpack.c.l.b16 %v2699
  %v2764 = vunpack.c.l.b16 %v2700
  %v2765 = vunpack.c.l.b16 %v2701
  %v2766 = vunpack.c.l.b16 %v2702
  %v2767 = vunpack.c.l.b16 %v2703
  %v2768 = vunpack.c.l.b16 %v2704
  %v2769 = vunpack.c.l.b16 %v2705
  %v2770 = vunpack.c.l.b16 %v2706
  %v2771 = vunpack.c.l.b16 %v2707
  %v2772 = vunpack.c.l.b16 %v2708
  %v2773 = vunpack.c.l.b16 %v2709
  %v2774 = vunpack.c.l.b16 %v2710
  %v2775 = vunpack.c.l.b16 %v2711
  %v2776 = vunpack.c.l.b16 %v2712
  %v2777 = vunpack.c.l.b16 %v2713
  %v2778 = vunpack.c.l.b16 %v2714
  %v2779 = vunpack.c.l.b16 %v2715
  %v2780 = vunpack.c.l.b16 %v2716
  %v2781 = vunpack.c.l.b16 %v2717
  %v2782 = vunpack.c.l.b16 %v2718
  %v2783 = vunpack.c.l.b16 %v2719
  %v2784 = vunpack.c.l.b16 %v2720
  %v2785 = vunpack.c.l.b16 %v2721
  %v2786 = vunpack.c.l.b16 %v2722
  %v2787 = vunpack.c.l.b16 %v2723
  %v2788 = vunpack.c.l.b16 %v2724
  %v2789 = vunpack.c.l.b16 %v2725
  %v2790 = vunpack.c.l.b16 %v2726
  %v2791 = vpack.c.b16 %v2760, %v2759
  %v2792 = vpack.c.b16 %v2762, %v2761
  %v2793 = vpack.c.b16 %v2764, %v2763
  %v2794 = vpack.c.b16 %v2766, %v2765
  %v2795 = vpack.c.b16 %v2768, %v2767
  %v2796 = vpack.c.b16 %v2770, %v2769
  %v2797 = vpack.c.b16 %v2772, %v2771
  %v2798 = vpack.c.b16 %v2774, %v2773
  %v2799 = vpack.c.b16 %v2776, %v2775
  %v2800 = vpack.c.b16 %v2778, %v2777
  %v2801 = vpack.c.b16 %v2780, %v2779
  %v2802 = vpack.c.b16 %v2782, %v2781
  %v2803 = vpack.c.b16 %v2784, %v2783
  %v2804 = vpack.c.b16 %v2786, %v2785
  %v2805 = vpack.c.b16 %v2788, %v2787
  %v2806 = vpack.c.b16 %v2790, %v2789
  %2823 = vmatprep.subr.bf16.mxu0 0
  %2824 = vmatpush1.bf16.msra.mxu0 %v2798
  %2825 = vmatprep.subr.bf16.mxu0 0
  %2826 = vmatpush1.bf16.msra.mxu0 %v2797
  %2827 = vmatprep.subr.bf16.mxu0 0
  %2828 = vmatpush1.bf16.msra.mxu0 %v2796
  %2829 = vmatprep.subr.bf16.mxu0 0
  %2830 = vmatpush1.bf16.msra.mxu0 %v2795
  %2831 = vmatprep.subr.bf16.mxu0 0
  %2832 = vmatpush1.bf16.msra.mxu0 %v2794
  %2833 = vmatprep.subr.bf16.mxu0 0
  %2834 = vmatpush1.bf16.msra.mxu0 %v2793
  %2835 = vmatprep.subr.bf16.mxu0 0
  %2836 = vmatpush1.bf16.msra.mxu0 %v2792
  %2837 = vmatprep.subr.bf16.mxu0 0
  %2838 = vmatpush1.bf16.msra.mxu0 %v2791
  %2839 = vmatprep.subr.bf16.mxu0 0
  %2840 = vmatpush2.bf16.msra.mxu0 %v2806
  %2841 = vmatprep.subr.bf16.mxu0 0
  %2842 = vmatpush2.bf16.msra.mxu0 %v2805
  %2843 = vmatprep.subr.bf16.mxu0 0
  %2844 = vmatpush2.bf16.msra.mxu0 %v2804
  %2845 = vmatprep.subr.bf16.mxu0 0
  %2846 = vmatpush2.bf16.msra.mxu0 %v2803
  %2847 = vmatprep.subr.bf16.mxu0 0
  %2848 = vmatpush2.bf16.msra.mxu0 %v2802
  %2849 = vmatprep.subr.bf16.mxu0 0
  %2850 = vmatpush2.bf16.msra.mxu0 %v2801
  %2851 = vmatprep.subr.bf16.mxu0 0
  %2852 = vmatpush2.bf16.msra.mxu0 %v2800
  %2853 = vmatprep.subr.bf16.mxu0 0
  %2854 = vmatpush2.bf16.msra.mxu0 %v2799
  %2855 = vmatprep.mubr.bf16.mxu0 %v2682
  %2856 = vmatmul.mubr.bf16.gmra.mxu0 %v2681
  %v2857 = vpop.f32.mrf.mxu0
  %v2858 = vadd.f32 0.0, %v2857
  %v2859 = vpop.f32.mrf.mxu0
  %v2860 = vpop.f32.mrf.mxu0
  %v2861 = vadd.f32 0.0, %v2860
  %v2862 = vpop.f32.mrf.mxu0
  %2863 = vmatprep.mubr.bf16.mxu0 %v2684
  %2864 = vmatmul.mubr.bf16.gmra.mxu0 %v2683
  %v2865 = vpop.f32.mrf.mxu0
  %v2866 = vadd.f32 0.0, %v2865
  %v2867 = vpop.f32.mrf.mxu0
  %v2868 = vpop.f32.mrf.mxu0
  %v2869 = vadd.f32 0.0, %v2868
  %v2870 = vpop.f32.mrf.mxu0
  %2871 = vmatprep.mubr.bf16.mxu0 %v2686
  %2872 = vmatmul.mubr.bf16.gmra.mxu0 %v2685
  %v2873 = vpop.f32.mrf.mxu0
  %v2874 = vadd.f32 0.0, %v2873
  %v2875 = vpop.f32.mrf.mxu0
  %v2876 = vpop.f32.mrf.mxu0
  %v2877 = vadd.f32 0.0, %v2876
  %v2878 = vpop.f32.mrf.mxu0
  %2879 = vmatprep.mubr.bf16.mxu0 %v2688
  %2880 = vmatmul.mubr.bf16.gmra.mxu0 %v2687
  %v2881 = vpop.f32.mrf.mxu0
  %v2882 = vadd.f32 0.0, %v2881
  %v2883 = vpop.f32.mrf.mxu0
  %v2884 = vpop.f32.mrf.mxu0
  %v2885 = vadd.f32 0.0, %v2884
  %v2886 = vpop.f32.mrf.mxu0
  %2887 = vmatprep.mubr.bf16.mxu0 %v2690
  %2888 = vmatmul.mubr.bf16.gmra.mxu0 %v2689
  %v2889 = vpop.f32.mrf.mxu0
  %v2890 = vadd.f32 0.0, %v2889
  %v2891 = vpop.f32.mrf.mxu0
  %v2892 = vpop.f32.mrf.mxu0
  %v2893 = vadd.f32 0.0, %v2892
  %v2894 = vpop.f32.mrf.mxu0
  %2895 = vmatprep.mubr.bf16.mxu0 %v2692
  %2896 = vmatmul.mubr.bf16.gmra.mxu0 %v2691
  %v2897 = vpop.f32.mrf.mxu0
  %v2898 = vadd.f32 0.0, %v2897
  %v2899 = vpop.f32.mrf.mxu0
  %v2900 = vpop.f32.mrf.mxu0
  %v2901 = vadd.f32 0.0, %v2900
  %v2902 = vpop.f32.mrf.mxu0
  %2903 = vmatprep.mubr.bf16.mxu0 %v2694
  %2904 = vmatmul.mubr.bf16.gmra.mxu0 %v2693
  %v2905 = vpop.f32.mrf.mxu0
  %v2906 = vadd.f32 0.0, %v2905
  %v2907 = vpop.f32.mrf.mxu0
  %v2908 = vpop.f32.mrf.mxu0
  %v2909 = vadd.f32 0.0, %v2908
  %v2910 = vpop.f32.mrf.mxu0
  %2911 = vdwg.mxu0
  %2913 = vset.pattern.permute.xlu0 0
  %2914 = vperm.xlu0 %2913, %v100
  %v2915 = vpop.permute.xlu0 %2914
  %2918 = vset.pattern.permute.xlu0 0
  %2919 = vperm.xlu0 %2918, %v101
  %v2920 = vpop.permute.xlu0 %2919
  %2923 = vset.pattern.permute.xlu0 0
  %2924 = vperm.xlu0 %2923, %v102
  %v2925 = vpop.permute.xlu0 %2924
  %2928 = vset.pattern.permute.xlu0 0
  %2929 = vperm.xlu0 %2928, %v103
  %v2930 = vpop.permute.xlu0 %2929
  %2933 = vset.pattern.permute.xlu0 0
  %2934 = vperm.xlu0 %2933, %v104
  %v2935 = vpop.permute.xlu0 %2934
  %2938 = vset.pattern.permute.xlu0 0
  %2939 = vperm.xlu0 %2938, %v105
  %v2940 = vpop.permute.xlu0 %2939
  %2943 = vset.pattern.permute.xlu0 0
  %2944 = vperm.xlu0 %2943, %v106
  %v2945 = vpop.permute.xlu0 %2944
  %2948 = vset.pattern.permute.xlu0 0
  %2949 = vperm.xlu0 %2948, %v107
  %v2950 = vpop.permute.xlu0 %2949
  %2953 = vset.pattern.permute.xlu0 0
  %2954 = vperm.xlu0 %2953, %v108
  %v2955 = vpop.permute.xlu0 %2954
  %2958 = vset.pattern.permute.xlu0 0
  %2959 = vperm.xlu0 %2958, %v109
  %v2960 = vpop.permute.xlu0 %2959
  %2963 = vset.pattern.permute.xlu0 0
  %2964 = vperm.xlu0 %2963, %v110
  %v2965 = vpop.permute.xlu0 %2964
  %2968 = vset.pattern.permute.xlu0 0
  %2969 = vperm.xlu0 %2968, %v111
  %v2970 = vpop.permute.xlu0 %2969
  %2973 = vset.pattern.permute.xlu0 0
  %2974 = vperm.xlu0 %2973, %v112
  %v2975 = vpop.permute.xlu0 %2974
  %2978 = vset.pattern.permute.xlu0 0
  %2979 = vperm.xlu0 %2978, %v113
  %v2980 = vpop.permute.xlu0 %2979
  %v2982 = vmul.f32 %v2858, %v2915
  %v2983 = vmul.f32 %v2861, %v2920
  %v2984 = vmul.f32 %v2866, %v2925
  %v2985 = vmul.f32 %v2869, %v2930
  %v2986 = vmul.f32 %v2874, %v2935
  %v2987 = vmul.f32 %v2877, %v2940
  %v2988 = vmul.f32 %v2882, %v2945
  %v2989 = vmul.f32 %v2885, %v2950
  %v2990 = vmul.f32 %v2890, %v2955
  %v2991 = vmul.f32 %v2893, %v2960
  %v2992 = vmul.f32 %v2898, %v2965
  %v2993 = vmul.f32 %v2901, %v2970
  %v2994 = vmul.f32 %v2906, %v2975
  %v2995 = vmul.f32 %v2909, %v2980
  %v2996 = vadd.f32 %v2982, %v2983
  %v2997 = vadd.f32 %v2996, %v2984
  %v2998 = vadd.f32 %v2997, %v2985
  %v2999 = vadd.f32 %v2998, %v2986
  %v3000 = vadd.f32 %v2999, %v2987
  %v3001 = vadd.f32 %v3000, %v2988
  %v3002 = vadd.f32 %v3001, %v2989
  %v3003 = vadd.f32 %v3002, %v2990
  %v3004 = vadd.f32 %v3003, %v2991
  %v3005 = vadd.f32 %v3004, %v2992
  %v3006 = vadd.f32 %v3005, %v2993
  %v3007 = vadd.f32 %v3006, %v2994
  %v3008 = vadd.f32 %v3007, %v2995
  %v3009 = vrot.slane %v3008, 4
  %v3010 = vadd.f32 %v3008, %v3009
  %v3011 = vrot.slane %v3010, 2
  %v3012 = vadd.f32 %v3010, %v3011
  %v3013 = vrot.slane %v3012, 1
  %v3014 = vadd.f32 %v3012, %v3013
  %v3015 = vrcp.pop 98.0
  %v3016 = vmul.f32 %v3014, %v3015
  %v3017 = vsub.f32 %v2858, %v3016
  %v3018 = vsub.f32 %v2861, %v3016
  %v3019 = vsub.f32 %v2866, %v3016
  %v3020 = vsub.f32 %v2869, %v3016
  %v3021 = vsub.f32 %v2874, %v3016
  %v3022 = vsub.f32 %v2877, %v3016
  %v3023 = vsub.f32 %v2882, %v3016
  %v3024 = vsub.f32 %v2885, %v3016
  %v3025 = vsub.f32 %v2890, %v3016
  %v3026 = vsub.f32 %v2893, %v3016
  %v3027 = vsub.f32 %v2898, %v3016
  %v3028 = vsub.f32 %v2901, %v3016
  %v3029 = vsub.f32 %v2906, %v3016
  %v3030 = vsub.f32 %v2909, %v3016
  %v3031 = vmul.f32 %v3017, %v2915
  %v3032 = vmul.f32 %v3018, %v2920
  %v3033 = vmul.f32 %v3019, %v2925
  %v3034 = vmul.f32 %v3020, %v2930
  %v3035 = vmul.f32 %v3021, %v2935
  %v3036 = vmul.f32 %v3022, %v2940
  %v3037 = vmul.f32 %v3023, %v2945
  %v3038 = vmul.f32 %v3024, %v2950
  %v3039 = vmul.f32 %v3025, %v2955
  %v3040 = vmul.f32 %v3026, %v2960
  %v3041 = vmul.f32 %v3027, %v2965
  %v3042 = vmul.f32 %v3028, %v2970
  %v3043 = vmul.f32 %v3029, %v2975
  %v3044 = vmul.f32 %v3030, %v2980
  %v3045 = vmul.f32 %v3031, %v3031
  %v3046 = vmul.f32 %v3032, %v3032
  %v3047 = vmul.f32 %v3033, %v3033
  %v3048 = vmul.f32 %v3034, %v3034
  %v3049 = vmul.f32 %v3035, %v3035
  %v3050 = vmul.f32 %v3036, %v3036
  %v3051 = vmul.f32 %v3037, %v3037
  %v3052 = vmul.f32 %v3038, %v3038
  %v3053 = vmul.f32 %v3039, %v3039
  %v3054 = vmul.f32 %v3040, %v3040
  %v3055 = vmul.f32 %v3041, %v3041
  %v3056 = vmul.f32 %v3042, %v3042
  %v3057 = vmul.f32 %v3043, %v3043
  %v3058 = vmul.f32 %v3044, %v3044
  %v3059 = vadd.f32 %v3045, %v3046
  %v3060 = vadd.f32 %v3059, %v3047
  %v3061 = vadd.f32 %v3060, %v3048
  %v3062 = vadd.f32 %v3061, %v3049
  %v3063 = vadd.f32 %v3062, %v3050
  %v3064 = vadd.f32 %v3063, %v3051
  %v3065 = vadd.f32 %v3064, %v3052
  %v3066 = vadd.f32 %v3065, %v3053
  %v3067 = vadd.f32 %v3066, %v3054
  %v3068 = vadd.f32 %v3067, %v3055
  %v3069 = vadd.f32 %v3068, %v3056
  %v3070 = vadd.f32 %v3069, %v3057
  %v3071 = vadd.f32 %v3070, %v3058
  %v3072 = vrot.slane %v3071, 4
  %v3073 = vadd.f32 %v3071, %v3072
  %v3074 = vrot.slane %v3073, 2
  %v3075 = vadd.f32 %v3073, %v3074
  %v3076 = vrot.slane %v3075, 1
  %v3077 = vadd.f32 %v3075, %v3076
  %v3078 = vmul.f32 %v3077, %v3015
  %v3079 = vmax.f32 %v3078, 0.0
  %v3080 = vld [vmem:[%s6] sm:$0x1]
  %v3081 = vld [vmem:[%s7] sm:$0x1]
  %v3082 = vadd.f32 %v3079, 1e-05
  %v3083 = vrsqrt.pop %v3082
  %v3084 = vmul.f32 %v3031, %v3083
  %v3085 = vmul.f32 %v3032, %v3083
  %v3086 = vmul.f32 %v3033, %v3083
  %v3087 = vmul.f32 %v3034, %v3083
  %v3088 = vmul.f32 %v3035, %v3083
  %v3089 = vmul.f32 %v3036, %v3083
  %v3090 = vmul.f32 %v3037, %v3083
  %v3091 = vmul.f32 %v3038, %v3083
  %v3092 = vmul.f32 %v3039, %v3083
  %v3093 = vmul.f32 %v3040, %v3083
  %v3094 = vmul.f32 %v3041, %v3083
  %v3095 = vmul.f32 %v3042, %v3083
  %v3096 = vmul.f32 %v3043, %v3083
  %v3097 = vmul.f32 %v3044, %v3083
  %v3099 = vlaneseq
  %v3100 = vshrl.u32 %v3099, 7
  %v3101 = vsub.s32 0, %v3100
  %v3102 = vrot.slane %v3080, %v3101
  %v3104 = vmul.f32 %v3084, %v3102
  %v3105 = vmul.f32 %v3085, %v3102
  %v3106 = vmul.f32 %v3086, %v3102
  %v3107 = vmul.f32 %v3087, %v3102
  %v3108 = vmul.f32 %v3088, %v3102
  %v3109 = vmul.f32 %v3089, %v3102
  %v3110 = vmul.f32 %v3090, %v3102
  %v3111 = vmul.f32 %v3091, %v3102
  %v3112 = vmul.f32 %v3092, %v3102
  %v3113 = vmul.f32 %v3093, %v3102
  %v3114 = vmul.f32 %v3094, %v3102
  %v3115 = vmul.f32 %v3095, %v3102
  %v3116 = vmul.f32 %v3096, %v3102
  %v3117 = vmul.f32 %v3097, %v3102
  %v3119 = vlaneseq
  %v3120 = vshrl.u32 %v3119, 7
  %v3121 = vsub.s32 0, %v3120
  %v3122 = vrot.slane %v3081, %v3121
  %v3124 = vadd.f32 %v3104, %v3122
  %v3125 = vadd.f32 %v3105, %v3122
  %v3126 = vadd.f32 %v3106, %v3122
  %v3127 = vadd.f32 %v3107, %v3122
  %v3128 = vadd.f32 %v3108, %v3122
  %v3129 = vadd.f32 %v3109, %v3122
  %v3130 = vadd.f32 %v3110, %v3122
  %v3131 = vadd.f32 %v3111, %v3122
  %v3132 = vadd.f32 %v3112, %v3122
  %v3133 = vadd.f32 %v3113, %v3122
  %v3134 = vadd.f32 %v3114, %v3122
  %v3135 = vadd.f32 %v3115, %v3122
  %v3136 = vadd.f32 %v3116, %v3122
  %v3137 = vadd.f32 %v3117, %v3122
  %vm3138 = vcmp.gt.f32.partialorder %v3124, 0.0
  %vm3139 = vcmp.gt.f32.partialorder %v3125, 0.0
  %vm3140 = vcmp.gt.f32.partialorder %v3126, 0.0
  %vm3141 = vcmp.gt.f32.partialorder %v3127, 0.0
  %vm3142 = vcmp.gt.f32.partialorder %v3128, 0.0
  %vm3143 = vcmp.gt.f32.partialorder %v3129, 0.0
  %vm3144 = vcmp.gt.f32.partialorder %v3130, 0.0
  %vm3145 = vcmp.gt.f32.partialorder %v3131, 0.0
  %vm3146 = vcmp.gt.f32.partialorder %v3132, 0.0
  %vm3147 = vcmp.gt.f32.partialorder %v3133, 0.0
  %vm3148 = vcmp.gt.f32.partialorder %v3134, 0.0
  %vm3149 = vcmp.gt.f32.partialorder %v3135, 0.0
  %vm3150 = vcmp.gt.f32.partialorder %v3136, 0.0
  %vm3151 = vcmp.gt.f32.partialorder %v3137, 0.0
  %v3152 = vmul.f32 %v3124, 0.2
  %v3153 = vmul.f32 %v3125, 0.2
  %v3154 = vmul.f32 %v3126, 0.2
  %v3155 = vmul.f32 %v3127, 0.2
  %v3156 = vmul.f32 %v3128, 0.2
  %v3157 = vmul.f32 %v3129, 0.2
  %v3158 = vmul.f32 %v3130, 0.2
  %v3159 = vmul.f32 %v3131, 0.2
  %v3160 = vmul.f32 %v3132, 0.2
  %v3161 = vmul.f32 %v3133, 0.2
  %v3162 = vmul.f32 %v3134, 0.2
  %v3163 = vmul.f32 %v3135, 0.2
  %v3164 = vmul.f32 %v3136, 0.2
  %v3165 = vmul.f32 %v3137, 0.2
  %v3166 = vsel %vm3138, %v3124, %v3152
  %v3167 = vsel %vm3139, %v3125, %v3153
  %v3168 = vsel %vm3140, %v3126, %v3154
  %v3169 = vsel %vm3141, %v3127, %v3155
  %v3170 = vsel %vm3142, %v3128, %v3156
  %v3171 = vsel %vm3143, %v3129, %v3157
  %v3172 = vsel %vm3144, %v3130, %v3158
  %v3173 = vsel %vm3145, %v3131, %v3159
  %v3174 = vsel %vm3146, %v3132, %v3160
  %v3175 = vsel %vm3147, %v3133, %v3161
  %v3176 = vsel %vm3148, %v3134, %v3162
  %v3177 = vsel %vm3149, %v3135, %v3163
  %v3178 = vsel %vm3150, %v3136, %v3164
  %v3179 = vsel %vm3151, %v3137, %v3165
  %v3180 = vld [vmem:[%s9] sm:$0xff]
  %v3181 = vld [vmem:[%s9 + $0x8] sm:$0xff]
  %v3182 = vld [vmem:[%s9 + $0x10] sm:$0xff]
  %v3183 = vld [vmem:[%s9 + $0x18] sm:$0xff]
  %v3184 = vld [vmem:[%s9 + $0x20] sm:$0xff]
  %v3185 = vld [vmem:[%s9 + $0x28] sm:$0xff]
  %v3186 = vld [vmem:[%s9 + $0x30] sm:$0xff]
  %v3187 = vmul.f32 %v3166, %v3180
  %v3188 = vmul.f32 %v3167, %v3181
  %v3189 = vmul.f32 %v3168, %v3182
  %v3190 = vmul.f32 %v3169, %v3183
  %v3191 = vmul.f32 %v3170, %v3184
  %v3192 = vmul.f32 %v3171, %v3185
  %v3193 = vmul.f32 %v3172, %v3186
  %v3194 = vmul.f32 %v3173, %v3180
  %v3195 = vmul.f32 %v3174, %v3181
  %v3196 = vmul.f32 %v3175, %v3182
  %v3197 = vmul.f32 %v3176, %v3183
  %v3198 = vmul.f32 %v3177, %v3184
  %v3199 = vmul.f32 %v3178, %v3185
  %v3200 = vmul.f32 %v3179, %v3186
  %3201 = vadd.xlane.f32.xlu0 %v3187
  %v3202 = vpop.xlane.xlu0 %3201
  %3203 = vadd.xlane.f32.xlu0 %v3188
  %v3204 = vpop.xlane.xlu0 %3203
  %3205 = vadd.xlane.f32.xlu0 %v3189
  %v3206 = vpop.xlane.xlu0 %3205
  %3207 = vadd.xlane.f32.xlu0 %v3190
  %v3208 = vpop.xlane.xlu0 %3207
  %3209 = vadd.xlane.f32.xlu0 %v3191
  %v3210 = vpop.xlane.xlu0 %3209
  %3211 = vadd.xlane.f32.xlu0 %v3192
  %v3212 = vpop.xlane.xlu0 %3211
  %3213 = vadd.xlane.f32.xlu0 %v3193
  %v3214 = vpop.xlane.xlu0 %3213
  %3215 = vadd.xlane.f32.xlu0 %v3194
  %v3216 = vpop.xlane.xlu0 %3215
  %3217 = vadd.xlane.f32.xlu0 %v3195
  %v3218 = vpop.xlane.xlu0 %3217
  %3219 = vadd.xlane.f32.xlu0 %v3196
  %v3220 = vpop.xlane.xlu0 %3219
  %3221 = vadd.xlane.f32.xlu0 %v3197
  %v3222 = vpop.xlane.xlu0 %3221
  %3223 = vadd.xlane.f32.xlu0 %v3198
  %v3224 = vpop.xlane.xlu0 %3223
  %3225 = vadd.xlane.f32.xlu0 %v3199
  %v3226 = vpop.xlane.xlu0 %3225
  %3227 = vadd.xlane.f32.xlu0 %v3200
  %v3228 = vpop.xlane.xlu0 %3227
  %v3229 = vadd.f32 %v3202, %v3204
  %v3230 = vadd.f32 %v3229, %v3206
  %v3231 = vadd.f32 %v3230, %v3208
  %v3232 = vadd.f32 %v3231, %v3210
  %v3233 = vadd.f32 %v3232, %v3212
  %v3234 = vadd.f32 %v3233, %v3214
  %v3235 = vrot.slane %v3234, 4
  %v3236 = vadd.f32 %v3234, %v3235
  %v3237 = vrot.slane %v3236, 2
  %v3238 = vadd.f32 %v3236, %v3237
  %v3239 = vrot.slane %v3238, 1
  %v3240 = vadd.f32 %v3238, %v3239
  %v3241 = vadd.f32 %v3216, %v3218
  %v3242 = vadd.f32 %v3241, %v3220
  %v3243 = vadd.f32 %v3242, %v3222
  %v3244 = vadd.f32 %v3243, %v3224
  %v3245 = vadd.f32 %v3244, %v3226
  %v3246 = vadd.f32 %v3245, %v3228
  %v3247 = vrot.slane %v3246, 4
  %v3248 = vadd.f32 %v3246, %v3247
  %v3249 = vrot.slane %v3248, 2
  %v3250 = vadd.f32 %v3248, %v3249
  %v3251 = vrot.slane %v3250, 1
  %v3252 = vadd.f32 %v3250, %v3251
  %vm3255 = vcmask 1041409
  %v3256 = vsel %vm3255, %v3252, %v3240
  %3258 = vst [vmem:[%s10] sm:$0x3] %v3256
  // Predicated region
  $region42: #{discriminator_forward.1} parent=0 // pred_check
    _
  $region43: #{discriminator_forward.1} parent=0 // pred_check_branch
    %3260 = sbr.rel (0) target = $region45
  $region44: #{discriminator_forward.1} parent=0 // pred_region
    _
  $region45: #{discriminator_forward.1} parent=0 // pred_fallthru
    _
  // Predicated region
  $region46: #{discriminator_forward.1} parent=0 // pred_check
    _
  $region47: #{discriminator_forward.1} parent=0 // pred_check_branch
    %3262 = sbr.rel (0) target = $region49
  $region48: #{discriminator_forward.1} parent=0 // pred_region
    _
  $region49: #{discriminator_forward.1} parent=0 // pred_fallthru
    _

</llo_original>
